<compile_context>
chip_gen: v7x
topology: tpu7x:2x2x1
jax: 0.10.0
libtpu: 0.0.40
codegen_flags: <defaults>
</compile_context>

<pallas_src>
import functools
import math

import jax
import jax.numpy as jnp
from jax.experimental import pallas as pl
from jax.experimental.pallas import tpu as pltpu

LANE = 128
_TILE_CANDS = (2048, 1024, 512, 256, 128)


def _round_up(x, m):
    return ((x + m - 1) // m) * m


def _pad2d(a, rows, cols):
    r, c = a.shape
    if r == rows and c == cols:
        return a
    return jnp.pad(a, ((0, rows - r), (0, cols - c)))


def _divisor_tiles(n_pad):
    return [t for t in _TILE_CANDS if t <= n_pad and n_pad % t == 0]


def _vmem_budget():
    """Returns (vmem_limit_bytes, tile_budget_bytes), sized per generation.

    v7x has only 64 MiB of physical VMEM (vs 128 MiB on v5e/v6e), so query the
    hardware when possible and fall back to a v7x-safe value otherwise.
    """
    phys = 64 * 1024 * 1024
    try:
        cap = getattr(pltpu.get_tpu_info(), "vmem_capacity_bytes", None)
        if cap:
            phys = int(cap)
    except Exception:
        pass
    limit = min(phys - 16 * 1024 * 1024, 96 * 1024 * 1024)
    limit = max(limit, 32 * 1024 * 1024)
    return limit, limit - 8 * 1024 * 1024


def _select_agg_tiles(n_pad, f_out_pad, out_bytes, budget):
    """Pick (tm, tk) maximizing the per-step adj tile under the VMEM budget."""

    def need(tm, tk):
        return (2 * tm * tk * 2                   # adj  (bf16, double-buffered)
                + 2 * tk * f_out_pad * 2          # h    (bf16, double-buffered)
                + 2 * tm * f_out_pad * out_bytes  # out  (double-buffered)
                + tm * f_out_pad * 4)             # f32 accumulator scratch

    best = None
    for tm in _divisor_tiles(n_pad):
        # Keep >= 2 row tiles when possible so the "parallel" row axis can split
        # across v7x's two TensorCores without each re-streaming anything but adj.
        if n_pad >= 2 * LANE and n_pad // tm < 2:
            continue
        for tk in _divisor_tiles(n_pad):
            if need(tm, tk) > budget:
                continue
            key = (tm * tk, tk)
            if best is None or key > best[0]:
                best = (key, tm, tk)
    if best is None:
        return min(LANE, n_pad), min(LANE, n_pad)
    return best[1], best[2]


def _select_linear_tile(n_pad, f_in_pad, f_out_pad, budget):
    def need(tm):
        return (2 * tm * f_in_pad * 4           # x (f32, double-buffered)
                + 2 * f_in_pad * f_out_pad * 4  # W (f32, double-buffered)
                + 2 * 8 * f_out_pad * 4         # b (sublane-padded, double-buffered)
                + 2 * tm * f_out_pad * 2)       # out (bf16, double-buffered)

    for tm in _divisor_tiles(n_pad):
        if need(tm) <= budget:
            return tm
    return min(LANE, n_pad)


# --------------------------------------------------------------------------- #
# Kernel 1: feature transform  h = x @ W + b   (hoisted out of the adj loop)
# --------------------------------------------------------------------------- #
def _linear_kernel(x_ref, w_ref, b_ref, out_ref):
    # f32 matmul + f32 accumulation for fidelity (this stage is tiny vs. adj@h);
    # bf16 output since it is only ever consumed by the bf16 adj matmul.
    h = jnp.dot(x_ref[...].astype(jnp.float32), w_ref[...],
                preferred_element_type=jnp.float32)
    out_ref[...] = (h + b_ref[...]).astype(out_ref.dtype)


def linear(x_p, w_p, b_p, *, tile_budget, vmem_limit):
    n_pad, f_in_pad = x_p.shape
    f_out_pad = w_p.shape[1]
    tm = _select_linear_tile(n_pad, f_in_pad, f_out_pad, tile_budget)
    grid = (n_pad // tm,)

    flops = 2 * n_pad * f_in_pad * f_out_pad
    bytes_accessed = (x_p.size * x_p.dtype.itemsize
                      + grid[0] * (w_p.size * 4 + b_p.size * 4)
                      + n_pad * f_out_pad * 2)

    return pl.pallas_call(
        _linear_kernel,
        out_shape=jax.ShapeDtypeStruct((n_pad, f_out_pad), jnp.bfloat16),
        grid_spec=pltpu.PrefetchScalarGridSpec(
            num_scalar_prefetch=0,
            grid=grid,
            in_specs=[
                pl.BlockSpec((tm, f_in_pad), lambda i: (i, 0)),          # x
                pl.BlockSpec((f_in_pad, f_out_pad), lambda i: (0, 0)),   # W
                pl.BlockSpec((1, f_out_pad), lambda i: (0, 0)),          # b
            ],
            out_specs=pl.BlockSpec((tm, f_out_pad), lambda i: (i, 0)),
        ),
        compiler_params=pltpu.CompilerParams(
            dimension_semantics=("parallel",),
            vmem_limit_bytes=vmem_limit,
        ),
        cost_estimate=pl.CostEstimate(
            flops=int(flops), transcendentals=0,
            bytes_accessed=int(bytes_accessed)),
    )(x_p, w_p, b_p)


# --------------------------------------------------------------------------- #
# Kernel 2: graph aggregation  out = (relu?)(adj @ h)
# --------------------------------------------------------------------------- #
def _aggregate_kernel(adj_ref, h_ref, out_ref, acc_ref, *, apply_relu):
    k = pl.program_id(1)

    @pl.when(k == 0)
    def _():
        acc_ref[...] = jnp.zeros_like(acc_ref)

    # acc[i-tile] += adj[i-tile, k-tile] @ h[k-tile]   (bf16 MXU, f32 accumulate)
    acc_ref[...] += jnp.dot(adj_ref[...], h_ref[...],
                            preferred_element_type=jnp.float32)

    @pl.when(k == pl.num_programs(1) - 1)
    def _():
        out = acc_ref[...]
        if apply_relu:
            out = jnp.maximum(out, 0.0)
        out_ref[...] = out.astype(out_ref.dtype)


def aggregate(adj_p, h_p, *, apply_relu, out_dtype, tile_budget, vmem_limit):
    n_pad = adj_p.shape[0]
    f_out_pad = h_p.shape[1]
    out_bytes = jnp.dtype(out_dtype).itemsize
    tm, tk = _select_agg_tiles(n_pad, f_out_pad, out_bytes, tile_budget)
    grid = (n_pad // tm, n_pad // tk)

    flops = 2 * n_pad * n_pad * f_out_pad
    bytes_accessed = (adj_p.size * 2 + grid[0] * h_p.size * 2
                      + n_pad * f_out_pad * out_bytes)

    kernel = functools.partial(_aggregate_kernel, apply_relu=apply_relu)
    return pl.pallas_call(
        kernel,
        out_shape=jax.ShapeDtypeStruct((n_pad, f_out_pad), out_dtype),
        grid_spec=pltpu.PrefetchScalarGridSpec(
            num_scalar_prefetch=0,
            grid=grid,
            in_specs=[
                pl.BlockSpec((tm, tk), lambda i, k: (i, k)),          # adj
                pl.BlockSpec((tk, f_out_pad), lambda i, k: (k, 0)),   # h
            ],
            out_specs=pl.BlockSpec((tm, f_out_pad), lambda i, k: (i, 0)),
            scratch_shapes=[pltpu.VMEM((tm, f_out_pad), jnp.float32)],
        ),
        compiler_params=pltpu.CompilerParams(
            dimension_semantics=("parallel", "arbitrary"),
            vmem_limit_bytes=vmem_limit,
        ),
        cost_estimate=pl.CostEstimate(
            flops=int(flops), transcendentals=0,
            bytes_accessed=int(bytes_accessed)),
    )(adj_p, h_p)


# --------------------------------------------------------------------------- #
# Model forward
# --------------------------------------------------------------------------- #
def gcn_forward(x, adj, params):
    """GCN.forward: returns (logits, logits) like the PyTorch module."""
    n, nfeat = x.shape
    nhid = params["w1"].shape[1]
    nclass = params["w2"].shape[1]

    n_pad = _round_up(n, LANE)
    nfeat_pad = _round_up(nfeat, LANE)
    nhid_pad = _round_up(nhid, LANE)
    nclass_pad = _round_up(nclass, LANE)

    vmem_limit, tile_budget = _vmem_budget()

    # Pad/cast each operand exactly ONCE; adj (the dominant N^2 operand) is cast
    # to bf16 here and the same padded buffer feeds both layers.
    # NOTE: adj MUST be zero-padded: padded rows of h carry the bias (0 @ W + b
    # = b) and only adj's zero padding keeps them out of real output rows.
    adj_p = _pad2d(adj.astype(jnp.float32), n_pad, n_pad).astype(jnp.bfloat16)
    x_p = _pad2d(x.astype(jnp.float32), n_pad, nfeat_pad)
    w1_p = _pad2d(params["w1"].astype(jnp.float32), nfeat_pad, nhid_pad)
    b1_p = _pad2d(params["b1"].reshape(1, -1).astype(jnp.float32), 1, nhid_pad)
    w2_p = _pad2d(params["w2"].astype(jnp.float32), nhid_pad, nclass_pad)
    b2_p = _pad2d(params["b2"].reshape(1, -1).astype(jnp.float32), 1, nclass_pad)

    # Layer 1: relu(adj @ (x @ W1 + b1)); intermediate stays padded + bf16.
    h1 = linear(x_p, w1_p, b1_p, tile_budget=tile_budget, vmem_limit=vmem_limit)
    a1 = aggregate(adj_p, h1, apply_relu=True, out_dtype=jnp.bfloat16,
                   tile_budget=tile_budget, vmem_limit=vmem_limit)

    # Dropout: identity (inference mode).

    # Layer 2 consumes the still-padded bf16 activation directly (no re-pad/cast).
    h2 = linear(a1, w2_p, b2_p, tile_budget=tile_budget, vmem_limit=vmem_limit)
    out_p = aggregate(adj_p, h2, apply_relu=False, out_dtype=jnp.float32,
                      tile_budget=tile_budget, vmem_limit=vmem_limit)

    out = out_p[:n, :nclass]
    return out, out


def init_params(key, nfeat, nhid, nclass):
    """Deterministic nn.Linear-style init: U(-1/sqrt(fan_in), 1/sqrt(fan_in))."""
    k1, k2, k3, k4 = jax.random.split(key, 4)
    s1 = 1.0 / math.sqrt(nfeat)
    s2 = 1.0 / math.sqrt(nhid)
    return {
        "w1": jax.random.uniform(k1, (nfeat, nhid), jnp.float32, -s1, s1),
        "b1": jax.random.uniform(k2, (nhid,), jnp.float32, -s1, s1),
        "w2": jax.random.uniform(k3, (nhid, nclass), jnp.float32, -s2, s2),
        "b2": jax.random.uniform(k4, (nclass,), jnp.float32, -s2, s2),
    }


def _ref_gcn(x, adj, params):
    """Pure-JAX reference mirroring the kernels' precision choices."""
    adj_f = adj.astype(jnp.bfloat16).astype(jnp.float32)

    def layer(xi, w, b, relu):
        h = (xi.astype(jnp.float32) @ w.astype(jnp.float32) + b)
        h = h.astype(jnp.bfloat16).astype(jnp.float32)
        out = adj_f @ h
        if relu:
            out = jnp.maximum(out, 0.0)
        return out

    a1 = layer(x, params["w1"], params["b1"], True).astype(jnp.bfloat16)
    return layer(a1, params["w2"], params["b2"], False)


if __name__ == "__main__":
    key = jax.random.PRNGKey(0)
    k_x, k_a, k_p = jax.random.split(key, 3)

    # Small synthetic graph: N nodes, dims consistent with GCN(nfeat, nhid, nclass).
    N, nfeat, nhid, nclass = 64, 32, 32, 16

    x = jax.random.normal(k_x, (N, nfeat), jnp.float32)

    # Dense row-normalized adjacency (with self loops), standing in for edge_mat.
    a_raw = (jax.random.uniform(k_a, (N, N)) < 0.1).astype(jnp.float32)
    a_raw = a_raw + jnp.eye(N, dtype=jnp.float32)
    adj = a_raw / jnp.sum(a_raw, axis=1, keepdims=True)

    params = init_params(k_p, nfeat, nhid, nclass)

    fwd = jax.jit(gcn_forward)
    out1, out2 = fwd(x, adj, params)
    out1 = jax.block_until_ready(out1)

    ref = _ref_gcn(x, adj, params)
    assert out1.shape == (N, nclass)
    assert jnp.allclose(out1, ref, atol=1e-2, rtol=1e-2), (
        float(jnp.max(jnp.abs(out1 - ref))))

    print("KERNEL_OK")
</pallas_src>

<mosaic_0001>
module attributes {stable_mosaic.version = 11 : i64} {
  func.func @_linear_kernel(%arg0: i32, %arg1: memref<128x128xf32, #tpu.memory_space<vmem>>, %arg2: memref<128x128xf32, #tpu.memory_space<vmem>>, %arg3: memref<1x128xf32, #tpu.memory_space<vmem>>, %arg4: memref<128x128xbf16, #tpu.memory_space<vmem>>) attributes {dimension_semantics = [#tpu.dimension_semantics<parallel>], iteration_bounds = array<i64: 1>, scalar_prefetch = 0 : i64, scratch_operands = 0 : i64, tpu.core_type = #tpu.core_type<tc>, window_params = [{transform_indices = @transform_0, window_bounds = array<i64: 128, 128>}, {pipeline_mode = #tpu.pipeline_mode<synchronous>, transform_indices = @transform_1, window_bounds = array<i64: 128, 128>}, {pipeline_mode = #tpu.pipeline_mode<synchronous>, transform_indices = @transform_2, window_bounds = array<i64: 1, 128>}, {transform_indices = @transform_3, window_bounds = array<i64: 128, 128>}]} {
    %c0 = arith.constant 0 : index
    %c0_0 = arith.constant 0 : index
    %0 = vector.load %arg1[%c0, %c0_0] : memref<128x128xf32, #tpu.memory_space<vmem>>, vector<128x128xf32>
    %c0_1 = arith.constant 0 : index
    %c0_2 = arith.constant 0 : index
    %1 = vector.load %arg2[%c0_1, %c0_2] : memref<128x128xf32, #tpu.memory_space<vmem>>, vector<128x128xf32>
    %cst = arith.constant dense<0.000000e+00> : vector<128x128xf32>
    %2 = tpu.matmul %0, %1, %cst {dimension_numbers = #tpu.dot_dimension_numbers<[1], [0], [0], [1], [0, 0, 1, 1], [], []>} : vector<128x128xf32>, vector<128x128xf32>, vector<128x128xf32> -> vector<128x128xf32>
    %c0_3 = arith.constant 0 : index
    %c0_4 = arith.constant 0 : index
    %3 = vector.load %arg3[%c0_3, %c0_4] : memref<1x128xf32, #tpu.memory_space<vmem>>, vector<1x128xf32>
    %4 = vector.broadcast %3 : vector<1x128xf32> to vector<128x128xf32>
    %5 = arith.addf %2, %4 : vector<128x128xf32>
    %6 = arith.truncf %5 : vector<128x128xf32> to vector<128x128xbf16>
    %c0_5 = arith.constant 0 : index
    %c0_6 = arith.constant 0 : index
    %7 = vector.load %arg4[%c0_5, %c0_6] : memref<128x128xbf16, #tpu.memory_space<vmem>>, vector<128x128xbf16>
    tpu.vector_store %arg4[%c0_5, %c0_6], %6 {strides = array<i32>} : memref<128x128xbf16, #tpu.memory_space<vmem>>, vector<128x128xbf16>,
    return
  }
  func.func @transform_0(%arg0: i32) -> (i32, i32) {
    %c0_i32 = arith.constant 0 : i32
    %c0_i32_0 = arith.constant 0 : i32
    return %arg0, %c0_i32 : i32, i32
  }
  func.func @transform_1(%arg0: i32) -> (i32, i32) {
    %c0_i32 = arith.constant 0 : i32
    %c0_i32_0 = arith.constant 0 : i32
    %c0_i32_1 = arith.constant 0 : i32
    return %c0_i32, %c0_i32_0 : i32, i32
  }
  func.func @transform_2(%arg0: i32) -> (i32, i32) {
    %c0_i32 = arith.constant 0 : i32
    %c0_i32_0 = arith.constant 0 : i32
    %c0_i32_1 = arith.constant 0 : i32
    return %c0_i32, %c0_i32_0 : i32, i32
  }
  func.func @transform_3(%arg0: i32) -> (i32, i32) {
    %c0_i32 = arith.constant 0 : i32
    %c0_i32_0 = arith.constant 0 : i32
    return %arg0, %c0_i32 : i32, i32
  }
}

module attributes {stable_mosaic.version = 11 : i64} {
  func.func @_aggregate_kernel(%arg0: i32, %arg1: i32, %arg2: memref<128x128xbf16, #tpu.memory_space<vmem>>, %arg3: memref<128x128xbf16, #tpu.memory_space<vmem>>, %arg4: memref<128x128xbf16, #tpu.memory_space<vmem>>, %arg5: memref<128x128xf32, #tpu.memory_space<vmem>>) attributes {dimension_semantics = [#tpu.dimension_semantics<parallel>, #tpu.dimension_semantics<arbitrary>], iteration_bounds = array<i64: 1, 1>, scalar_prefetch = 0 : i64, scratch_operands = 1 : i64, tpu.core_type = #tpu.core_type<tc>, window_params = [{transform_indices = @transform_0, window_bounds = array<i64: 128, 128>}, {transform_indices = @transform_1, window_bounds = array<i64: 128, 128>}, {transform_indices = @transform_2, window_bounds = array<i64: 128, 128>}]} {
    %c0_i32 = arith.constant 0 : i32
    %0 = arith.cmpi eq, %arg1, %c0_i32 : i32
    %1 = arith.extui %0 : i1 to i32
    %c0_i32_0 = arith.constant 0 : i32
    %2 = arith.cmpi ne, %1, %c0_i32_0 : i32
    scf.if %2 {
      %cst_10 = arith.constant 0.000000e+00 : f32
      %12 = vector.broadcast %cst_10 : f32 to vector<128x128xf32>
      %c0_11 = arith.constant 0 : index
      %c0_12 = arith.constant 0 : index
      %13 = vector.load %arg5[%c0_11, %c0_12] : memref<128x128xf32, #tpu.memory_space<vmem>>, vector<128x128xf32>
      tpu.vector_store %arg5[%c0_11, %c0_12], %12 {strides = array<i32>} : memref<128x128xf32, #tpu.memory_space<vmem>>, vector<128x128xf32>,
    } else {
    }
    %c0 = arith.constant 0 : index
    %c0_1 = arith.constant 0 : index
    %3 = vector.load %arg5[%c0, %c0_1] : memref<128x128xf32, #tpu.memory_space<vmem>>, vector<128x128xf32>
    %c0_2 = arith.constant 0 : index
    %c0_3 = arith.constant 0 : index
    %4 = vector.load %arg2[%c0_2, %c0_3] : memref<128x128xbf16, #tpu.memory_space<vmem>>, vector<128x128xbf16>
    %c0_4 = arith.constant 0 : index
    %c0_5 = arith.constant 0 : index
    %5 = vector.load %arg3[%c0_4, %c0_5] : memref<128x128xbf16, #tpu.memory_space<vmem>>, vector<128x128xbf16>
    %cst = arith.constant dense<0.000000e+00> : vector<128x128xf32>
    %6 = tpu.matmul %4, %5, %cst {dimension_numbers = #tpu.dot_dimension_numbers<[1], [0], [0], [1], [0, 0, 1, 1], [], []>} : vector<128x128xbf16>, vector<128x128xbf16>, vector<128x128xf32> -> vector<128x128xf32>
    %7 = arith.addf %3, %6 : vector<128x128xf32>
    %c0_6 = arith.constant 0 : index
    %c0_7 = arith.constant 0 : index
    %8 = vector.load %arg5[%c0_6, %c0_7] : memref<128x128xf32, #tpu.memory_space<vmem>>, vector<128x128xf32>
    tpu.vector_store %arg5[%c0_6, %c0_7], %7 {strides = array<i32>} : memref<128x128xf32, #tpu.memory_space<vmem>>, vector<128x128xf32>,
    %c0_i32_8 = arith.constant 0 : i32
    %9 = arith.cmpi eq, %arg1, %c0_i32_8 : i32
    %10 = arith.extui %9 : i1 to i32
    %c0_i32_9 = arith.constant 0 : i32
    %11 = arith.cmpi ne, %10, %c0_i32_9 : i32
    scf.if %11 {
      %c0_10 = arith.constant 0 : index
      %c0_11 = arith.constant 0 : index
      %12 = vector.load %arg5[%c0_10, %c0_11] : memref<128x128xf32, #tpu.memory_space<vmem>>, vector<128x128xf32>
      %cst_12 = arith.constant 0.000000e+00 : f32
      %13 = vector.broadcast %cst_12 : f32 to vector<128x128xf32>
      %14 = arith.maximumf %12, %13 : vector<128x128xf32>
      %15 = arith.truncf %14 : vector<128x128xf32> to vector<128x128xbf16>
      %c0_13 = arith.constant 0 : index
      %c0_14 = arith.constant 0 : index
      %16 = vector.load %arg4[%c0_13, %c0_14] : memref<128x128xbf16, #tpu.memory_space<vmem>>, vector<128x128xbf16>
      tpu.vector_store %arg4[%c0_13, %c0_14], %15 {strides = array<i32>} : memref<128x128xbf16, #tpu.memory_space<vmem>>, vector<128x128xbf16>,
    } else {
    }
    return
  }
  func.func @transform_0(%arg0: i32, %arg1: i32) -> (i32, i32) {
    %c0_i32 = arith.constant 0 : i32
    return %arg0, %arg1 : i32, i32
  }
  func.func @transform_1(%arg0: i32, %arg1: i32) -> (i32, i32) {
    %c0_i32 = arith.constant 0 : i32
    %c0_i32_0 = arith.constant 0 : i32
    return %arg1, %c0_i32 : i32, i32
  }
  func.func @transform_2(%arg0: i32, %arg1: i32) -> (i32, i32) {
    %c0_i32 = arith.constant 0 : i32
    %c0_i32_0 = arith.constant 0 : i32
    return %arg0, %c0_i32 : i32, i32
  }
}

module attributes {stable_mosaic.version = 11 : i64} {
  func.func @_linear_kernel(%arg0: i32, %arg1: memref<128x128xbf16, #tpu.memory_space<vmem>>, %arg2: memref<128x128xf32, #tpu.memory_space<vmem>>, %arg3: memref<1x128xf32, #tpu.memory_space<vmem>>, %arg4: memref<128x128xbf16, #tpu.memory_space<vmem>>) attributes {dimension_semantics = [#tpu.dimension_semantics<parallel>], iteration_bounds = array<i64: 1>, scalar_prefetch = 0 : i64, scratch_operands = 0 : i64, tpu.core_type = #tpu.core_type<tc>, window_params = [{transform_indices = @transform_0, window_bounds = array<i64: 128, 128>}, {pipeline_mode = #tpu.pipeline_mode<synchronous>, transform_indices = @transform_1, window_bounds = array<i64: 128, 128>}, {pipeline_mode = #tpu.pipeline_mode<synchronous>, transform_indices = @transform_2, window_bounds = array<i64: 1, 128>}, {transform_indices = @transform_3, window_bounds = array<i64: 128, 128>}]} {
    %c0 = arith.constant 0 : index
    %c0_0 = arith.constant 0 : index
    %0 = vector.load %arg1[%c0, %c0_0] : memref<128x128xbf16, #tpu.memory_space<vmem>>, vector<128x128xbf16>
    %1 = arith.extf %0 : vector<128x128xbf16> to vector<128x128xf32>
    %c0_1 = arith.constant 0 : index
    %c0_2 = arith.constant 0 : index
    %2 = vector.load %arg2[%c0_1, %c0_2] : memref<128x128xf32, #tpu.memory_space<vmem>>, vector<128x128xf32>
    %cst = arith.constant dense<0.000000e+00> : vector<128x128xf32>
    %3 = tpu.matmul %1, %2, %cst {dimension_numbers = #tpu.dot_dimension_numbers<[1], [0], [0], [1], [0, 0, 1, 1], [], []>} : vector<128x128xf32>, vector<128x128xf32>, vector<128x128xf32> -> vector<128x128xf32>
    %c0_3 = arith.constant 0 : index
    %c0_4 = arith.constant 0 : index
    %4 = vector.load %arg3[%c0_3, %c0_4] : memref<1x128xf32, #tpu.memory_space<vmem>>, vector<1x128xf32>
    %5 = vector.broadcast %4 : vector<1x128xf32> to vector<128x128xf32>
    %6 = arith.addf %3, %5 : vector<128x128xf32>
    %7 = arith.truncf %6 : vector<128x128xf32> to vector<128x128xbf16>
    %c0_5 = arith.constant 0 : index
    %c0_6 = arith.constant 0 : index
    %8 = vector.load %arg4[%c0_5, %c0_6] : memref<128x128xbf16, #tpu.memory_space<vmem>>, vector<128x128xbf16>
    tpu.vector_store %arg4[%c0_5, %c0_6], %7 {strides = array<i32>} : memref<128x128xbf16, #tpu.memory_space<vmem>>, vector<128x128xbf16>,
    return
  }
  func.func @transform_0(%arg0: i32) -> (i32, i32) {
    %c0_i32 = arith.constant 0 : i32
    %c0_i32_0 = arith.constant 0 : i32
    return %arg0, %c0_i32 : i32, i32
  }
  func.func @transform_1(%arg0: i32) -> (i32, i32) {
    %c0_i32 = arith.constant 0 : i32
    %c0_i32_0 = arith.constant 0 : i32
    %c0_i32_1 = arith.constant 0 : i32
    return %c0_i32, %c0_i32_0 : i32, i32
  }
  func.func @transform_2(%arg0: i32) -> (i32, i32) {
    %c0_i32 = arith.constant 0 : i32
    %c0_i32_0 = arith.constant 0 : i32
    %c0_i32_1 = arith.constant 0 : i32
    return %c0_i32, %c0_i32_0 : i32, i32
  }
  func.func @transform_3(%arg0: i32) -> (i32, i32) {
    %c0_i32 = arith.constant 0 : i32
    %c0_i32_0 = arith.constant 0 : i32
    return %arg0, %c0_i32 : i32, i32
  }
}

module attributes {stable_mosaic.version = 11 : i64} {
  func.func @_aggregate_kernel(%arg0: i32, %arg1: i32, %arg2: memref<128x128xbf16, #tpu.memory_space<vmem>>, %arg3: memref<128x128xbf16, #tpu.memory_space<vmem>>, %arg4: memref<128x128xf32, #tpu.memory_space<vmem>>, %arg5: memref<128x128xf32, #tpu.memory_space<vmem>>) attributes {dimension_semantics = [#tpu.dimension_semantics<parallel>, #tpu.dimension_semantics<arbitrary>], iteration_bounds = array<i64: 1, 1>, scalar_prefetch = 0 : i64, scratch_operands = 1 : i64, tpu.core_type = #tpu.core_type<tc>, window_params = [{transform_indices = @transform_0, window_bounds = array<i64: 128, 128>}, {transform_indices = @transform_1, window_bounds = array<i64: 128, 128>}, {transform_indices = @transform_2, window_bounds = array<i64: 128, 128>}]} {
    %c0_i32 = arith.constant 0 : i32
    %0 = arith.cmpi eq, %arg1, %c0_i32 : i32
    %1 = arith.extui %0 : i1 to i32
    %c0_i32_0 = arith.constant 0 : i32
    %2 = arith.cmpi ne, %1, %c0_i32_0 : i32
    scf.if %2 {
      %cst_10 = arith.constant 0.000000e+00 : f32
      %12 = vector.broadcast %cst_10 : f32 to vector<128x128xf32>
      %c0_11 = arith.constant 0 : index
      %c0_12 = arith.constant 0 : index
      %13 = vector.load %arg5[%c0_11, %c0_12] : memref<128x128xf32, #tpu.memory_space<vmem>>, vector<128x128xf32>
      tpu.vector_store %arg5[%c0_11, %c0_12], %12 {strides = array<i32>} : memref<128x128xf32, #tpu.memory_space<vmem>>, vector<128x128xf32>,
    } else {
    }
    %c0 = arith.constant 0 : index
    %c0_1 = arith.constant 0 : index
    %3 = vector.load %arg5[%c0, %c0_1] : memref<128x128xf32, #tpu.memory_space<vmem>>, vector<128x128xf32>
    %c0_2 = arith.constant 0 : index
    %c0_3 = arith.constant 0 : index
    %4 = vector.load %arg2[%c0_2, %c0_3] : memref<128x128xbf16, #tpu.memory_space<vmem>>, vector<128x128xbf16>
    %c0_4 = arith.constant 0 : index
    %c0_5 = arith.constant 0 : index
    %5 = vector.load %arg3[%c0_4, %c0_5] : memref<128x128xbf16, #tpu.memory_space<vmem>>, vector<128x128xbf16>
    %cst = arith.constant dense<0.000000e+00> : vector<128x128xf32>
    %6 = tpu.matmul %4, %5, %cst {dimension_numbers = #tpu.dot_dimension_numbers<[1], [0], [0], [1], [0, 0, 1, 1], [], []>} : vector<128x128xbf16>, vector<128x128xbf16>, vector<128x128xf32> -> vector<128x128xf32>
    %7 = arith.addf %3, %6 : vector<128x128xf32>
    %c0_6 = arith.constant 0 : index
    %c0_7 = arith.constant 0 : index
    %8 = vector.load %arg5[%c0_6, %c0_7] : memref<128x128xf32, #tpu.memory_space<vmem>>, vector<128x128xf32>
    tpu.vector_store %arg5[%c0_6, %c0_7], %7 {strides = array<i32>} : memref<128x128xf32, #tpu.memory_space<vmem>>, vector<128x128xf32>,
    %c0_i32_8 = arith.constant 0 : i32
    %9 = arith.cmpi eq, %arg1, %c0_i32_8 : i32
    %10 = arith.extui %9 : i1 to i32
    %c0_i32_9 = arith.constant 0 : i32
    %11 = arith.cmpi ne, %10, %c0_i32_9 : i32
    scf.if %11 {
      %c0_10 = arith.constant 0 : index
      %c0_11 = arith.constant 0 : index
      %12 = vector.load %arg5[%c0_10, %c0_11] : memref<128x128xf32, #tpu.memory_space<vmem>>, vector<128x128xf32>
      %c0_12 = arith.constant 0 : index
      %c0_13 = arith.constant 0 : index
      %13 = vector.load %arg4[%c0_12, %c0_13] : memref<128x128xf32, #tpu.memory_space<vmem>>, vector<128x128xf32>
      tpu.vector_store %arg4[%c0_12, %c0_13], %12 {strides = array<i32>} : memref<128x128xf32, #tpu.memory_space<vmem>>, vector<128x128xf32>,
    } else {
    }
    return
  }
  func.func @transform_0(%arg0: i32, %arg1: i32) -> (i32, i32) {
    %c0_i32 = arith.constant 0 : i32
    return %arg0, %arg1 : i32, i32
  }
  func.func @transform_1(%arg0: i32, %arg1: i32) -> (i32, i32) {
    %c0_i32 = arith.constant 0 : i32
    %c0_i32_0 = arith.constant 0 : i32
    return %arg1, %c0_i32 : i32, i32
  }
  func.func @transform_2(%arg0: i32, %arg1: i32) -> (i32, i32) {
    %c0_i32 = arith.constant 0 : i32
    %c0_i32_0 = arith.constant 0 : i32
    return %arg0, %c0_i32 : i32, i32
  }
}

</mosaic_0001>

<llo_original>
// kernel: gcn_forward.6
$region0: #{gcn_forward.6}
  #allocation0 [shape = 'u32[]', space=smem, size = 0x4, offset = 0x4, fixed_abs, tag = 'smem constant byte address 0x4 - core index']
  #allocation1 [shape = 'u32[144,128]{1,0:T(1,128)}', space=vmem, size = 0x12000, scoped, tag = 'internal scratch']
  %s0 = inlined_call_operand.vmem [shape: bf16[128,128], index: 0, kind: input, shape index: {}]
  %s1 = inlined_call_operand.vmem [shape: f32[128,128], index: 1, kind: input, shape index: {}]
  %s2 = inlined_call_operand.vmem [shape: f32[1,128], index: 2, kind: input, shape index: {}]
  %s3 = inlined_call_operand.vmem [shape: bf16[128,128], index: 3, kind: output, shape index: {}]
  %s4 = sld [smem:[#allocation0]]
  $region22: #{gcn_forward.6} parent=0
    _
  %s6 = ssub.s32 1, %s4
  %s7 = scalar_select 0, %s6, %s4
  // Predicated region
  $region2: #{gcn_forward.6} parent=0 // pred_check
    _
  $region3: #{gcn_forward.6} parent=0 // pred_check_branch
    %9 = sbr.rel (0) target = $region5
  $region4: #{gcn_forward.6} parent=0 // pred_region
    _
  $region5: #{gcn_forward.6} parent=0 // pred_fallthru
    _
  // Predicated region
  $region6: #{gcn_forward.6} parent=0 // pred_check
    _
  $region7: #{gcn_forward.6} parent=0 // pred_check_branch
    %11 = sbr.rel (0) target = $region9
  $region8: #{gcn_forward.6} parent=0 // pred_region
    _
  $region9: #{gcn_forward.6} parent=0 // pred_fallthru
    _
  // Predicated region
  $region10: #{gcn_forward.6} parent=0 // pred_check
    _
  $region11: #{gcn_forward.6} parent=0 // pred_check_branch
    %13 = sbr.rel (0) target = $region13
  $region12: #{gcn_forward.6} parent=0 // pred_region
    _
  $region13: #{gcn_forward.6} parent=0 // pred_fallthru
    _
  %v14 = vld [vmem:[%s0] sm:$0xf]
  %v15 = vld [vmem:[%s0 + $0x4] sm:$0xf]
  %v16 = vld [vmem:[%s0 + $0x8] sm:$0xf]
  %v17 = vld [vmem:[%s0 + $0xc] sm:$0xf]
  %v18 = vld [vmem:[%s0 + $0x10] sm:$0xf]
  %v19 = vld [vmem:[%s0 + $0x14] sm:$0xf]
  %v20 = vld [vmem:[%s0 + $0x18] sm:$0xf]
  %v21 = vld [vmem:[%s0 + $0x1c] sm:$0xf]
  %v22 = vld [vmem:[%s0 + $0x20] sm:$0xf]
  %v23 = vld [vmem:[%s0 + $0x24] sm:$0xf]
  %v24 = vld [vmem:[%s0 + $0x28] sm:$0xf]
  %v25 = vld [vmem:[%s0 + $0x2c] sm:$0xf]
  %v26 = vld [vmem:[%s0 + $0x30] sm:$0xf]
  %v27 = vld [vmem:[%s0 + $0x34] sm:$0xf]
  %v28 = vld [vmem:[%s0 + $0x38] sm:$0xf]
  %v29 = vld [vmem:[%s0 + $0x3c] sm:$0xf]
  %v30 = vunpack.c.l.bf16 %v14
  %v31 = vunpack.c.l.bf16 %v15
  %v32 = vunpack.c.l.bf16 %v16
  %v33 = vunpack.c.l.bf16 %v17
  %v34 = vunpack.c.l.bf16 %v18
  %v35 = vunpack.c.l.bf16 %v19
  %v36 = vunpack.c.l.bf16 %v20
  %v37 = vunpack.c.l.bf16 %v21
  %v38 = vunpack.c.l.bf16 %v22
  %v39 = vunpack.c.l.bf16 %v23
  %v40 = vunpack.c.l.bf16 %v24
  %v41 = vunpack.c.l.bf16 %v25
  %v42 = vunpack.c.l.bf16 %v26
  %v43 = vunpack.c.l.bf16 %v27
  %v44 = vunpack.c.l.bf16 %v28
  %v45 = vunpack.c.l.bf16 %v29
  %v46 = vld [vmem:[%s1] sm:$0xff]
  %v47 = vld [vmem:[%s1 + $0x8] sm:$0xff]
  %v48 = vld [vmem:[%s1 + $0x10] sm:$0xff]
  %v49 = vld [vmem:[%s1 + $0x18] sm:$0xff]
  %v50 = vld [vmem:[%s1 + $0x20] sm:$0xff]
  %v51 = vld [vmem:[%s1 + $0x28] sm:$0xff]
  %v52 = vld [vmem:[%s1 + $0x30] sm:$0xff]
  %v53 = vld [vmem:[%s1 + $0x38] sm:$0xff]
  %v54 = vld [vmem:[%s1 + $0x40] sm:$0xff]
  %v55 = vld [vmem:[%s1 + $0x48] sm:$0xff]
  %v56 = vld [vmem:[%s1 + $0x50] sm:$0xff]
  %v57 = vld [vmem:[%s1 + $0x58] sm:$0xff]
  %v58 = vld [vmem:[%s1 + $0x60] sm:$0xff]
  %v59 = vld [vmem:[%s1 + $0x68] sm:$0xff]
  %v60 = vld [vmem:[%s1 + $0x70] sm:$0xff]
  %v61 = vld [vmem:[%s1 + $0x78] sm:$0xff]
  %v62 = vld [vmem:[%s2] sm:$0x1]
  %v64 = vlaneseq
  %v65 = vshrl.u32 %v64, 7
  %v66 = vsub.s32 0, %v65
  %v67 = vrot.slane %v62, %v66
  %69 = vmatprep.subr.mxu0 0.0
  %70 = vmatpush1.msra.mxu0 %v46
  %71 = vmatprep.subr.mxu0 0.0
  %72 = vmatpush1.msra.mxu0 %v47
  %73 = vmatprep.subr.mxu0 0.0
  %74 = vmatpush1.msra.mxu0 %v48
  %75 = vmatprep.subr.mxu0 0.0
  %76 = vmatpush1.msra.mxu0 %v49
  %77 = vmatprep.subr.mxu0 0.0
  %78 = vmatpush1.msra.mxu0 %v50
  %79 = vmatprep.subr.mxu0 0.0
  %80 = vmatpush1.msra.mxu0 %v51
  %81 = vmatprep.subr.mxu0 0.0
  %82 = vmatpush1.msra.mxu0 %v52
  %83 = vmatprep.subr.mxu0 0.0
  %84 = vmatpush1.msra.mxu0 %v53
  %85 = vmatprep.subr.mxu0 0.0
  %86 = vmatpush1.msra.mxu0 %v54
  %87 = vmatprep.subr.mxu0 0.0
  %88 = vmatpush1.msra.mxu0 %v55
  %89 = vmatprep.subr.mxu0 0.0
  %90 = vmatpush1.msra.mxu0 %v56
  %91 = vmatprep.subr.mxu0 0.0
  %92 = vmatpush1.msra.mxu0 %v57
  %93 = vmatprep.subr.mxu0 0.0
  %94 = vmatpush1.msra.mxu0 %v58
  %95 = vmatprep.subr.mxu0 0.0
  %96 = vmatpush1.msra.mxu0 %v59
  %97 = vmatprep.subr.mxu0 0.0
  %98 = vmatpush1.msra.mxu0 %v60
  %99 = vmatprep.subr.mxu0 0.0
  %100 = vmatpush1.msra.mxu0 %v61
  %101 = vmatprep.subr.mxu0 0.0
  %102 = vmatpush1.msra.mxu0 0.0
  %103 = vmatprep.subr.mxu0 0.0
  %104 = vmatpush1.msra.mxu0 0.0
  %105 = vmatprep.subr.mxu0 0.0
  %106 = vmatpush1.msra.mxu0 0.0
  %107 = vmatprep.subr.mxu0 0.0
  %108 = vmatpush1.msra.mxu0 0.0
  %109 = vmatprep.subr.mxu0 0.0
  %110 = vmatpush1.msra.mxu0 0.0
  %111 = vmatprep.subr.mxu0 0.0
  %112 = vmatpush1.msra.mxu0 0.0
  %113 = vmatprep.subr.mxu0 0.0
  %114 = vmatpush1.msra.mxu0 0.0
  %115 = vmatprep.subr.mxu0 0.0
  %116 = vmatpush1.msra.mxu0 0.0
  %117 = vmatprep.subr.mxu0 0.0
  %118 = vmatpush1.msra.mxu0 0.0
  %119 = vmatprep.subr.mxu0 0.0
  %120 = vmatpush1.msra.mxu0 0.0
  %121 = vmatprep.subr.mxu0 0.0
  %122 = vmatpush1.msra.mxu0 0.0
  %123 = vmatprep.subr.mxu0 0.0
  %124 = vmatpush1.msra.mxu0 0.0
  %125 = vmatprep.subr.mxu0 0.0
  %126 = vmatpush1.msra.mxu0 0.0
  %127 = vmatprep.subr.mxu0 0.0
  %128 = vmatpush1.msra.mxu0 0.0
  %129 = vmatprep.subr.mxu0 0.0
  %130 = vmatpush1.msra.mxu0 0.0
  %131 = vmatprep.subr.mxu0 0.0
  %132 = vmatpush1.msra.mxu0 0.0
  %133 = vmatprep.mubr.f32.mxu0 0.0
  %134 = vmatmul.mubr.f32.gmra.mrb[0].mxu0 %v30
  %v135 = vpop.f32.mrb[0].mxu0
  %v136 = vadd.f32 %v67, %v135
  %v137 = vpop.f32.mrb[0].mxu0
  %138 = vmatprep.mubr.f32.mxu0 0.0
  %139 = vmatmul.mubr.f32.gmra.mrb[0].mxu0 %v31
  %v140 = vpop.f32.mrb[0].mxu0
  %v141 = vadd.f32 %v67, %v140
  %v142 = vpop.f32.mrb[0].mxu0
  %143 = vmatprep.mubr.f32.mxu0 0.0
  %144 = vmatmul.mubr.f32.gmra.mrb[0].mxu0 %v32
  %v145 = vpop.f32.mrb[0].mxu0
  %v146 = vadd.f32 %v67, %v145
  %v147 = vpop.f32.mrb[0].mxu0
  %148 = vmatprep.mubr.f32.mxu0 0.0
  %149 = vmatmul.mubr.f32.gmra.mrb[0].mxu0 %v33
  %v150 = vpop.f32.mrb[0].mxu0
  %v151 = vadd.f32 %v67, %v150
  %v152 = vpop.f32.mrb[0].mxu0
  %153 = vmatprep.mubr.f32.mxu0 0.0
  %154 = vmatmul.mubr.f32.gmra.mrb[0].mxu0 %v34
  %v155 = vpop.f32.mrb[0].mxu0
  %v156 = vadd.f32 %v67, %v155
  %v157 = vpop.f32.mrb[0].mxu0
  %158 = vmatprep.mubr.f32.mxu0 0.0
  %159 = vmatmul.mubr.f32.gmra.mrb[0].mxu0 %v35
  %v160 = vpop.f32.mrb[0].mxu0
  %v161 = vadd.f32 %v67, %v160
  %v162 = vpop.f32.mrb[0].mxu0
  %163 = vmatprep.mubr.f32.mxu0 0.0
  %164 = vmatmul.mubr.f32.gmra.mrb[0].mxu0 %v36
  %v165 = vpop.f32.mrb[0].mxu0
  %v166 = vadd.f32 %v67, %v165
  %v167 = vpop.f32.mrb[0].mxu0
  %168 = vmatprep.mubr.f32.mxu0 0.0
  %169 = vmatmul.mubr.f32.gmra.mrb[0].mxu0 %v37
  %v170 = vpop.f32.mrb[0].mxu0
  %v171 = vadd.f32 %v67, %v170
  %v172 = vpop.f32.mrb[0].mxu0
  %173 = vmatprep.mubr.f32.mxu0 0.0
  %174 = vmatmul.mubr.f32.gmra.mrb[0].mxu0 %v38
  %v175 = vpop.f32.mrb[0].mxu0
  %v176 = vadd.f32 %v67, %v175
  %v177 = vpop.f32.mrb[0].mxu0
  %178 = vmatprep.mubr.f32.mxu0 0.0
  %179 = vmatmul.mubr.f32.gmra.mrb[0].mxu0 %v39
  %v180 = vpop.f32.mrb[0].mxu0
  %v181 = vadd.f32 %v67, %v180
  %v182 = vpop.f32.mrb[0].mxu0
  %183 = vmatprep.mubr.f32.mxu0 0.0
  %184 = vmatmul.mubr.f32.gmra.mrb[0].mxu0 %v40
  %v185 = vpop.f32.mrb[0].mxu0
  %v186 = vadd.f32 %v67, %v185
  %v187 = vpop.f32.mrb[0].mxu0
  %188 = vmatprep.mubr.f32.mxu0 0.0
  %189 = vmatmul.mubr.f32.gmra.mrb[0].mxu0 %v41
  %v190 = vpop.f32.mrb[0].mxu0
  %v191 = vadd.f32 %v67, %v190
  %v192 = vpop.f32.mrb[0].mxu0
  %193 = vmatprep.mubr.f32.mxu0 0.0
  %194 = vmatmul.mubr.f32.gmra.mrb[0].mxu0 %v42
  %v195 = vpop.f32.mrb[0].mxu0
  %v196 = vadd.f32 %v67, %v195
  %v197 = vpop.f32.mrb[0].mxu0
  %198 = vmatprep.mubr.f32.mxu0 0.0
  %199 = vmatmul.mubr.f32.gmra.mrb[0].mxu0 %v43
  %v200 = vpop.f32.mrb[0].mxu0
  %v201 = vadd.f32 %v67, %v200
  %v202 = vpop.f32.mrb[0].mxu0
  %203 = vmatprep.mubr.f32.mxu0 0.0
  %204 = vmatmul.mubr.f32.gmra.mrb[0].mxu0 %v44
  %v205 = vpop.f32.mrb[0].mxu0
  %v206 = vadd.f32 %v67, %v205
  %v207 = vpop.f32.mrb[0].mxu0
  %208 = vmatprep.mubr.f32.mxu0 0.0
  %209 = vmatmul.mubr.f32.gmra.mrb[0].mxu0 %v45
  %v210 = vpop.f32.mrb[0].mxu0
  %v211 = vadd.f32 %v67, %v210
  %v212 = vpop.f32.mrb[0].mxu0
  %213 = vdwg.mxu0
  %v214 = vpack.c.bf16 %v141, %v136
  %v215 = vpack.c.bf16 %v151, %v146
  %v216 = vpack.c.bf16 %v161, %v156
  %v217 = vpack.c.bf16 %v171, %v166
  %v218 = vpack.c.bf16 %v181, %v176
  %v219 = vpack.c.bf16 %v191, %v186
  %v220 = vpack.c.bf16 %v201, %v196
  %v221 = vpack.c.bf16 %v211, %v206
  %v230 = vunpack.c.l.b16 %v214
  %v231 = vunpack.c.h.b16 %v214
  %v232 = vunpack.c.l.b16 %v215
  %v233 = vunpack.c.h.b16 %v215
  %v234 = vunpack.c.l.b16 %v216
  %v235 = vunpack.c.h.b16 %v216
  %v236 = vunpack.c.l.b16 %v217
  %v237 = vunpack.c.h.b16 %v217
  %v238 = vunpack.c.l.b16 %v218
  %v239 = vunpack.c.h.b16 %v218
  %v240 = vunpack.c.l.b16 %v219
  %v241 = vunpack.c.h.b16 %v219
  %v242 = vunpack.c.l.b16 %v220
  %v243 = vunpack.c.h.b16 %v220
  %v244 = vunpack.c.l.b16 %v221
  %v245 = vunpack.c.h.b16 %v221
  %v246 = vpack.c.b16 %v230, %v230
  %v247 = vpack.c.b16 %v231, %v231
  %v248 = vpack.c.b16 %v232, %v232
  %v249 = vpack.c.b16 %v233, %v233
  %v250 = vpack.c.b16 %v234, %v234
  %v251 = vpack.c.b16 %v235, %v235
  %v252 = vpack.c.b16 %v236, %v236
  %v253 = vpack.c.b16 %v237, %v237
  %v254 = vpack.c.b16 %v238, %v238
  %v255 = vpack.c.b16 %v239, %v239
  %v256 = vpack.c.b16 %v240, %v240
  %v257 = vpack.c.b16 %v241, %v241
  %v258 = vpack.c.b16 %v242, %v242
  %v259 = vpack.c.b16 %v243, %v243
  %v260 = vpack.c.b16 %v244, %v244
  %v261 = vpack.c.b16 %v245, %v245
  %278 = vst [vmem:[%s3] sm:$0xf] %v246
  %279 = vst [vmem:[%s3 + $0x4] sm:$0xf] %v247
  %280 = vst [vmem:[%s3 + $0x8] sm:$0xf] %v248
  %281 = vst [vmem:[%s3 + $0xc] sm:$0xf] %v249
  %282 = vst [vmem:[%s3 + $0x10] sm:$0xf] %v250
  %283 = vst [vmem:[%s3 + $0x14] sm:$0xf] %v251
  %284 = vst [vmem:[%s3 + $0x18] sm:$0xf] %v252
  %285 = vst [vmem:[%s3 + $0x1c] sm:$0xf] %v253
  %286 = vst [vmem:[%s3 + $0x20] sm:$0xf] %v254
  %287 = vst [vmem:[%s3 + $0x24] sm:$0xf] %v255
  %288 = vst [vmem:[%s3 + $0x28] sm:$0xf] %v256
  %289 = vst [vmem:[%s3 + $0x2c] sm:$0xf] %v257
  %290 = vst [vmem:[%s3 + $0x30] sm:$0xf] %v258
  %291 = vst [vmem:[%s3 + $0x34] sm:$0xf] %v259
  %292 = vst [vmem:[%s3 + $0x38] sm:$0xf] %v260
  %293 = vst [vmem:[%s3 + $0x3c] sm:$0xf] %v261
  // Predicated region
  $region14: #{gcn_forward.6} parent=0 // pred_check
    _
  $region15: #{gcn_forward.6} parent=0 // pred_check_branch
    %295 = sbr.rel (0) target = $region17
  $region16: #{gcn_forward.6} parent=0 // pred_region
    _
  $region17: #{gcn_forward.6} parent=0 // pred_fallthru
    _
  // Predicated region
  $region18: #{gcn_forward.6} parent=0 // pred_check
    _
  $region19: #{gcn_forward.6} parent=0 // pred_check_branch
    %297 = sbr.rel (0) target = $region21
  $region20: #{gcn_forward.6} parent=0 // pred_region
    _
  $region21: #{gcn_forward.6} parent=0 // pred_fallthru
    _

// kernel: gcn_forward.4
$region0: #{gcn_forward.4}
  #allocation0 [shape = 'u32[]', space=smem, size = 0x4, offset = 0x4, fixed_abs, tag = 'smem constant byte address 0x4 - core index']
  #allocation1 [shape = 'u32[144,128]{1,0:T(1,128)}', space=vmem, size = 0x12000, scoped, tag = 'internal scratch']
  %s0 = inlined_call_operand.vmem [shape: f32[128,128], index: 0, kind: input, shape index: {}]
  %s1 = inlined_call_operand.vmem [shape: f32[128,128], index: 1, kind: input, shape index: {}]
  %s2 = inlined_call_operand.vmem [shape: f32[1,128], index: 2, kind: input, shape index: {}]
  %s3 = inlined_call_operand.vmem [shape: bf16[128,128], index: 3, kind: output, shape index: {}]
  %s4 = sld [smem:[#allocation0]]
  $region22: #{gcn_forward.4} parent=0
    _
  %s6 = ssub.s32 1, %s4
  %s7 = scalar_select 0, %s6, %s4
  // Predicated region
  $region2: #{gcn_forward.4} parent=0 // pred_check
    _
  $region3: #{gcn_forward.4} parent=0 // pred_check_branch
    %9 = sbr.rel (0) target = $region5
  $region4: #{gcn_forward.4} parent=0 // pred_region
    _
  $region5: #{gcn_forward.4} parent=0 // pred_fallthru
    _
  // Predicated region
  $region6: #{gcn_forward.4} parent=0 // pred_check
    _
  $region7: #{gcn_forward.4} parent=0 // pred_check_branch
    %11 = sbr.rel (0) target = $region9
  $region8: #{gcn_forward.4} parent=0 // pred_region
    _
  $region9: #{gcn_forward.4} parent=0 // pred_fallthru
    _
  // Predicated region
  $region10: #{gcn_forward.4} parent=0 // pred_check
    _
  $region11: #{gcn_forward.4} parent=0 // pred_check_branch
    %13 = sbr.rel (0) target = $region13
  $region12: #{gcn_forward.4} parent=0 // pred_region
    _
  $region13: #{gcn_forward.4} parent=0 // pred_fallthru
    _
  %v14 = vld [vmem:[%s0] sm:$0xff]
  %v15 = vld [vmem:[%s0 + $0x8] sm:$0xff]
  %v16 = vld [vmem:[%s0 + $0x10] sm:$0xff]
  %v17 = vld [vmem:[%s0 + $0x18] sm:$0xff]
  %v18 = vld [vmem:[%s0 + $0x20] sm:$0xff]
  %v19 = vld [vmem:[%s0 + $0x28] sm:$0xff]
  %v20 = vld [vmem:[%s0 + $0x30] sm:$0xff]
  %v21 = vld [vmem:[%s0 + $0x38] sm:$0xff]
  %v22 = vld [vmem:[%s0 + $0x40] sm:$0xff]
  %v23 = vld [vmem:[%s0 + $0x48] sm:$0xff]
  %v24 = vld [vmem:[%s0 + $0x50] sm:$0xff]
  %v25 = vld [vmem:[%s0 + $0x58] sm:$0xff]
  %v26 = vld [vmem:[%s0 + $0x60] sm:$0xff]
  %v27 = vld [vmem:[%s0 + $0x68] sm:$0xff]
  %v28 = vld [vmem:[%s0 + $0x70] sm:$0xff]
  %v29 = vld [vmem:[%s0 + $0x78] sm:$0xff]
  %v30 = vld [vmem:[%s1] sm:$0xff]
  %v31 = vld [vmem:[%s1 + $0x8] sm:$0xff]
  %v32 = vld [vmem:[%s1 + $0x10] sm:$0xff]
  %v33 = vld [vmem:[%s1 + $0x18] sm:$0xff]
  %v34 = vld [vmem:[%s1 + $0x20] sm:$0xff]
  %v35 = vld [vmem:[%s1 + $0x28] sm:$0xff]
  %v36 = vld [vmem:[%s1 + $0x30] sm:$0xff]
  %v37 = vld [vmem:[%s1 + $0x38] sm:$0xff]
  %v38 = vld [vmem:[%s1 + $0x40] sm:$0xff]
  %v39 = vld [vmem:[%s1 + $0x48] sm:$0xff]
  %v40 = vld [vmem:[%s1 + $0x50] sm:$0xff]
  %v41 = vld [vmem:[%s1 + $0x58] sm:$0xff]
  %v42 = vld [vmem:[%s1 + $0x60] sm:$0xff]
  %v43 = vld [vmem:[%s1 + $0x68] sm:$0xff]
  %v44 = vld [vmem:[%s1 + $0x70] sm:$0xff]
  %v45 = vld [vmem:[%s1 + $0x78] sm:$0xff]
  %v46 = vld [vmem:[%s2] sm:$0x1]
  %v48 = vlaneseq
  %v49 = vshrl.u32 %v48, 7
  %v50 = vsub.s32 0, %v49
  %v51 = vrot.slane %v46, %v50
  %53 = vmatprep.subr.mxu0 0.0
  %54 = vmatpush1.msra.mxu0 %v30
  %55 = vmatprep.subr.mxu0 0.0
  %56 = vmatpush1.msra.mxu0 %v31
  %57 = vmatprep.subr.mxu0 0.0
  %58 = vmatpush1.msra.mxu0 %v32
  %59 = vmatprep.subr.mxu0 0.0
  %60 = vmatpush1.msra.mxu0 %v33
  %61 = vmatprep.subr.mxu0 0.0
  %62 = vmatpush1.msra.mxu0 %v34
  %63 = vmatprep.subr.mxu0 0.0
  %64 = vmatpush1.msra.mxu0 %v35
  %65 = vmatprep.subr.mxu0 0.0
  %66 = vmatpush1.msra.mxu0 %v36
  %67 = vmatprep.subr.mxu0 0.0
  %68 = vmatpush1.msra.mxu0 %v37
  %69 = vmatprep.subr.mxu0 0.0
  %70 = vmatpush1.msra.mxu0 %v38
  %71 = vmatprep.subr.mxu0 0.0
  %72 = vmatpush1.msra.mxu0 %v39
  %73 = vmatprep.subr.mxu0 0.0
  %74 = vmatpush1.msra.mxu0 %v40
  %75 = vmatprep.subr.mxu0 0.0
  %76 = vmatpush1.msra.mxu0 %v41
  %77 = vmatprep.subr.mxu0 0.0
  %78 = vmatpush1.msra.mxu0 %v42
  %79 = vmatprep.subr.mxu0 0.0
  %80 = vmatpush1.msra.mxu0 %v43
  %81 = vmatprep.subr.mxu0 0.0
  %82 = vmatpush1.msra.mxu0 %v44
  %83 = vmatprep.subr.mxu0 0.0
  %84 = vmatpush1.msra.mxu0 %v45
  %85 = vmatprep.subr.mxu0 0.0
  %86 = vmatpush1.msra.mxu0 0.0
  %87 = vmatprep.subr.mxu0 0.0
  %88 = vmatpush1.msra.mxu0 0.0
  %89 = vmatprep.subr.mxu0 0.0
  %90 = vmatpush1.msra.mxu0 0.0
  %91 = vmatprep.subr.mxu0 0.0
  %92 = vmatpush1.msra.mxu0 0.0
  %93 = vmatprep.subr.mxu0 0.0
  %94 = vmatpush1.msra.mxu0 0.0
  %95 = vmatprep.subr.mxu0 0.0
  %96 = vmatpush1.msra.mxu0 0.0
  %97 = vmatprep.subr.mxu0 0.0
  %98 = vmatpush1.msra.mxu0 0.0
  %99 = vmatprep.subr.mxu0 0.0
  %100 = vmatpush1.msra.mxu0 0.0
  %101 = vmatprep.subr.mxu0 0.0
  %102 = vmatpush1.msra.mxu0 0.0
  %103 = vmatprep.subr.mxu0 0.0
  %104 = vmatpush1.msra.mxu0 0.0
  %105 = vmatprep.subr.mxu0 0.0
  %106 = vmatpush1.msra.mxu0 0.0
  %107 = vmatprep.subr.mxu0 0.0
  %108 = vmatpush1.msra.mxu0 0.0
  %109 = vmatprep.subr.mxu0 0.0
  %110 = vmatpush1.msra.mxu0 0.0
  %111 = vmatprep.subr.mxu0 0.0
  %112 = vmatpush1.msra.mxu0 0.0
  %113 = vmatprep.subr.mxu0 0.0
  %114 = vmatpush1.msra.mxu0 0.0
  %115 = vmatprep.subr.mxu0 0.0
  %116 = vmatpush1.msra.mxu0 0.0
  %117 = vmatprep.mubr.f32.mxu0 0.0
  %118 = vmatmul.mubr.f32.gmra.mrb[0].mxu0 %v14
  %v119 = vpop.f32.mrb[0].mxu0
  %v120 = vadd.f32 %v51, %v119
  %v121 = vpop.f32.mrb[0].mxu0
  %122 = vmatprep.mubr.f32.mxu0 0.0
  %123 = vmatmul.mubr.f32.gmra.mrb[0].mxu0 %v15
  %v124 = vpop.f32.mrb[0].mxu0
  %v125 = vadd.f32 %v51, %v124
  %v126 = vpop.f32.mrb[0].mxu0
  %127 = vmatprep.mubr.f32.mxu0 0.0
  %128 = vmatmul.mubr.f32.gmra.mrb[0].mxu0 %v16
  %v129 = vpop.f32.mrb[0].mxu0
  %v130 = vadd.f32 %v51, %v129
  %v131 = vpop.f32.mrb[0].mxu0
  %132 = vmatprep.mubr.f32.mxu0 0.0
  %133 = vmatmul.mubr.f32.gmra.mrb[0].mxu0 %v17
  %v134 = vpop.f32.mrb[0].mxu0
  %v135 = vadd.f32 %v51, %v134
  %v136 = vpop.f32.mrb[0].mxu0
  %137 = vmatprep.mubr.f32.mxu0 0.0
  %138 = vmatmul.mubr.f32.gmra.mrb[0].mxu0 %v18
  %v139 = vpop.f32.mrb[0].mxu0
  %v140 = vadd.f32 %v51, %v139
  %v141 = vpop.f32.mrb[0].mxu0
  %142 = vmatprep.mubr.f32.mxu0 0.0
  %143 = vmatmul.mubr.f32.gmra.mrb[0].mxu0 %v19
  %v144 = vpop.f32.mrb[0].mxu0
  %v145 = vadd.f32 %v51, %v144
  %v146 = vpop.f32.mrb[0].mxu0
  %147 = vmatprep.mubr.f32.mxu0 0.0
  %148 = vmatmul.mubr.f32.gmra.mrb[0].mxu0 %v20
  %v149 = vpop.f32.mrb[0].mxu0
  %v150 = vadd.f32 %v51, %v149
  %v151 = vpop.f32.mrb[0].mxu0
  %152 = vmatprep.mubr.f32.mxu0 0.0
  %153 = vmatmul.mubr.f32.gmra.mrb[0].mxu0 %v21
  %v154 = vpop.f32.mrb[0].mxu0
  %v155 = vadd.f32 %v51, %v154
  %v156 = vpop.f32.mrb[0].mxu0
  %157 = vmatprep.mubr.f32.mxu0 0.0
  %158 = vmatmul.mubr.f32.gmra.mrb[0].mxu0 %v22
  %v159 = vpop.f32.mrb[0].mxu0
  %v160 = vadd.f32 %v51, %v159
  %v161 = vpop.f32.mrb[0].mxu0
  %162 = vmatprep.mubr.f32.mxu0 0.0
  %163 = vmatmul.mubr.f32.gmra.mrb[0].mxu0 %v23
  %v164 = vpop.f32.mrb[0].mxu0
  %v165 = vadd.f32 %v51, %v164
  %v166 = vpop.f32.mrb[0].mxu0
  %167 = vmatprep.mubr.f32.mxu0 0.0
  %168 = vmatmul.mubr.f32.gmra.mrb[0].mxu0 %v24
  %v169 = vpop.f32.mrb[0].mxu0
  %v170 = vadd.f32 %v51, %v169
  %v171 = vpop.f32.mrb[0].mxu0
  %172 = vmatprep.mubr.f32.mxu0 0.0
  %173 = vmatmul.mubr.f32.gmra.mrb[0].mxu0 %v25
  %v174 = vpop.f32.mrb[0].mxu0
  %v175 = vadd.f32 %v51, %v174
  %v176 = vpop.f32.mrb[0].mxu0
  %177 = vmatprep.mubr.f32.mxu0 0.0
  %178 = vmatmul.mubr.f32.gmra.mrb[0].mxu0 %v26
  %v179 = vpop.f32.mrb[0].mxu0
  %v180 = vadd.f32 %v51, %v179
  %v181 = vpop.f32.mrb[0].mxu0
  %182 = vmatprep.mubr.f32.mxu0 0.0
  %183 = vmatmul.mubr.f32.gmra.mrb[0].mxu0 %v27
  %v184 = vpop.f32.mrb[0].mxu0
  %v185 = vadd.f32 %v51, %v184
  %v186 = vpop.f32.mrb[0].mxu0
  %187 = vmatprep.mubr.f32.mxu0 0.0
  %188 = vmatmul.mubr.f32.gmra.mrb[0].mxu0 %v28
  %v189 = vpop.f32.mrb[0].mxu0
  %v190 = vadd.f32 %v51, %v189
  %v191 = vpop.f32.mrb[0].mxu0
  %192 = vmatprep.mubr.f32.mxu0 0.0
  %193 = vmatmul.mubr.f32.gmra.mrb[0].mxu0 %v29
  %v194 = vpop.f32.mrb[0].mxu0
  %v195 = vadd.f32 %v51, %v194
  %v196 = vpop.f32.mrb[0].mxu0
  %197 = vdwg.mxu0
  %v198 = vpack.c.bf16 %v125, %v120
  %v199 = vpack.c.bf16 %v135, %v130
  %v200 = vpack.c.bf16 %v145, %v140
  %v201 = vpack.c.bf16 %v155, %v150
  %v202 = vpack.c.bf16 %v165, %v160
  %v203 = vpack.c.bf16 %v175, %v170
  %v204 = vpack.c.bf16 %v185, %v180
  %v205 = vpack.c.bf16 %v195, %v190
  %v214 = vunpack.c.l.b16 %v198
  %v215 = vunpack.c.h.b16 %v198
  %v216 = vunpack.c.l.b16 %v199
  %v217 = vunpack.c.h.b16 %v199
  %v218 = vunpack.c.l.b16 %v200
  %v219 = vunpack.c.h.b16 %v200
  %v220 = vunpack.c.l.b16 %v201
  %v221 = vunpack.c.h.b16 %v201
  %v222 = vunpack.c.l.b16 %v202
  %v223 = vunpack.c.h.b16 %v202
  %v224 = vunpack.c.l.b16 %v203
  %v225 = vunpack.c.h.b16 %v203
  %v226 = vunpack.c.l.b16 %v204
  %v227 = vunpack.c.h.b16 %v204
  %v228 = vunpack.c.l.b16 %v205
  %v229 = vunpack.c.h.b16 %v205
  %v230 = vpack.c.b16 %v214, %v214
  %v231 = vpack.c.b16 %v215, %v215
  %v232 = vpack.c.b16 %v216, %v216
  %v233 = vpack.c.b16 %v217, %v217
  %v234 = vpack.c.b16 %v218, %v218
  %v235 = vpack.c.b16 %v219, %v219
  %v236 = vpack.c.b16 %v220, %v220
  %v237 = vpack.c.b16 %v221, %v221
  %v238 = vpack.c.b16 %v222, %v222
  %v239 = vpack.c.b16 %v223, %v223
  %v240 = vpack.c.b16 %v224, %v224
  %v241 = vpack.c.b16 %v225, %v225
  %v242 = vpack.c.b16 %v226, %v226
  %v243 = vpack.c.b16 %v227, %v227
  %v244 = vpack.c.b16 %v228, %v228
  %v245 = vpack.c.b16 %v229, %v229
  %262 = vst [vmem:[%s3] sm:$0xf] %v230
  %263 = vst [vmem:[%s3 + $0x4] sm:$0xf] %v231
  %264 = vst [vmem:[%s3 + $0x8] sm:$0xf] %v232
  %265 = vst [vmem:[%s3 + $0xc] sm:$0xf] %v233
  %266 = vst [vmem:[%s3 + $0x10] sm:$0xf] %v234
  %267 = vst [vmem:[%s3 + $0x14] sm:$0xf] %v235
  %268 = vst [vmem:[%s3 + $0x18] sm:$0xf] %v236
  %269 = vst [vmem:[%s3 + $0x1c] sm:$0xf] %v237
  %270 = vst [vmem:[%s3 + $0x20] sm:$0xf] %v238
  %271 = vst [vmem:[%s3 + $0x24] sm:$0xf] %v239
  %272 = vst [vmem:[%s3 + $0x28] sm:$0xf] %v240
  %273 = vst [vmem:[%s3 + $0x2c] sm:$0xf] %v241
  %274 = vst [vmem:[%s3 + $0x30] sm:$0xf] %v242
  %275 = vst [vmem:[%s3 + $0x34] sm:$0xf] %v243
  %276 = vst [vmem:[%s3 + $0x38] sm:$0xf] %v244
  %277 = vst [vmem:[%s3 + $0x3c] sm:$0xf] %v245
  // Predicated region
  $region14: #{gcn_forward.4} parent=0 // pred_check
    _
  $region15: #{gcn_forward.4} parent=0 // pred_check_branch
    %279 = sbr.rel (0) target = $region17
  $region16: #{gcn_forward.4} parent=0 // pred_region
    _
  $region17: #{gcn_forward.4} parent=0 // pred_fallthru
    _
  // Predicated region
  $region18: #{gcn_forward.4} parent=0 // pred_check
    _
  $region19: #{gcn_forward.4} parent=0 // pred_check_branch
    %281 = sbr.rel (0) target = $region21
  $region20: #{gcn_forward.4} parent=0 // pred_region
    _
  $region21: #{gcn_forward.4} parent=0 // pred_fallthru
    _

// kernel: gcn_forward.7
$region0: #{gcn_forward.7}
  #allocation0 [shape = 'u32[]', space=smem, size = 0x4, offset = 0x4, fixed_abs, tag = 'smem constant byte address 0x4 - core index']
  #allocation1 [shape = 'u32[144,128]{1,0:T(1,128)}', space=vmem, size = 0x12000, scoped, tag = 'internal scratch']
  #allocation2 [shape = 'f32[128,128]{1,0:T(8,128)}', space=vmem, size = 0x10000, scoped, tag = 'scratch operand']
  %s0 = inlined_call_operand.vmem [shape: bf16[128,128], index: 0, kind: input, shape index: {}]
  %s1 = inlined_call_operand.vmem [shape: bf16[128,128], index: 1, kind: input, shape index: {}]
  %s2 = inlined_call_operand.vmem [shape: f32[128,128], index: 2, kind: output, shape index: {}]
  %s3 = sld [smem:[#allocation0]]
  $region26: #{gcn_forward.7} parent=0
    _
  %s5 = ssub.s32 1, %s3
  %s6 = scalar_select 0, %s5, %s3
  // Predicated region
  $region2: #{gcn_forward.7} parent=0 // pred_check
    _
  $region3: #{gcn_forward.7} parent=0 // pred_check_branch
    %8 = sbr.rel (0) target = $region5
  $region4: #{gcn_forward.7} parent=0 // pred_region
    _
  $region5: #{gcn_forward.7} parent=0 // pred_fallthru
    _
  // Predicated region
  $region6: #{gcn_forward.7} parent=0 // pred_check
    _
  $region7: #{gcn_forward.7} parent=0 // pred_check_branch
    %10 = sbr.rel (0) target = $region9
  $region8: #{gcn_forward.7} parent=0 // pred_region
    _
  $region9: #{gcn_forward.7} parent=0 // pred_fallthru
    _
  %p12 = scmp.eq.s32.totalorder 0, 0
  // Predicated region
  $region10: #{gcn_forward.7} parent=0 // pred_check
    %p13 = pneg %p12
  $region11: #{gcn_forward.7} parent=0 // pred_check_branch
    %15 = sbr.rel (%p13) target = $region13
  $region12: #{gcn_forward.7} parent=0 // pred_region
    %16 = vst [vmem:[#allocation2] sm:$0xff] 0.0
    %17 = vst [vmem:[#allocation2 + $0x8] sm:$0xff] 0.0
    %18 = vst [vmem:[#allocation2 + $0x10] sm:$0xff] 0.0
    %19 = vst [vmem:[#allocation2 + $0x18] sm:$0xff] 0.0
    %20 = vst [vmem:[#allocation2 + $0x20] sm:$0xff] 0.0
    %21 = vst [vmem:[#allocation2 + $0x28] sm:$0xff] 0.0
    %22 = vst [vmem:[#allocation2 + $0x30] sm:$0xff] 0.0
    %23 = vst [vmem:[#allocation2 + $0x38] sm:$0xff] 0.0
    %24 = vst [vmem:[#allocation2 + $0x40] sm:$0xff] 0.0
    %25 = vst [vmem:[#allocation2 + $0x48] sm:$0xff] 0.0
    %26 = vst [vmem:[#allocation2 + $0x50] sm:$0xff] 0.0
    %27 = vst [vmem:[#allocation2 + $0x58] sm:$0xff] 0.0
    %28 = vst [vmem:[#allocation2 + $0x60] sm:$0xff] 0.0
    %29 = vst [vmem:[#allocation2 + $0x68] sm:$0xff] 0.0
    %30 = vst [vmem:[#allocation2 + $0x70] sm:$0xff] 0.0
    %31 = vst [vmem:[#allocation2 + $0x78] sm:$0xff] 0.0
  $region13: #{gcn_forward.7} parent=0 // pred_fallthru
    _
  %v32 = vld [vmem:[#allocation2] sm:$0xff]
  %v33 = vld [vmem:[#allocation2 + $0x8] sm:$0xff]
  %v34 = vld [vmem:[#allocation2 + $0x10] sm:$0xff]
  %v35 = vld [vmem:[#allocation2 + $0x18] sm:$0xff]
  %v36 = vld [vmem:[#allocation2 + $0x20] sm:$0xff]
  %v37 = vld [vmem:[#allocation2 + $0x28] sm:$0xff]
  %v38 = vld [vmem:[#allocation2 + $0x30] sm:$0xff]
  %v39 = vld [vmem:[#allocation2 + $0x38] sm:$0xff]
  %v40 = vld [vmem:[#allocation2 + $0x40] sm:$0xff]
  %v41 = vld [vmem:[#allocation2 + $0x48] sm:$0xff]
  %v42 = vld [vmem:[#allocation2 + $0x50] sm:$0xff]
  %v43 = vld [vmem:[#allocation2 + $0x58] sm:$0xff]
  %v44 = vld [vmem:[#allocation2 + $0x60] sm:$0xff]
  %v45 = vld [vmem:[#allocation2 + $0x68] sm:$0xff]
  %v46 = vld [vmem:[#allocation2 + $0x70] sm:$0xff]
  %v47 = vld [vmem:[#allocation2 + $0x78] sm:$0xff]
  %v48 = vld [vmem:[%s0] sm:$0xf]
  %v49 = vld [vmem:[%s0 + $0x4] sm:$0xf]
  %v50 = vld [vmem:[%s0 + $0x8] sm:$0xf]
  %v51 = vld [vmem:[%s0 + $0xc] sm:$0xf]
  %v52 = vld [vmem:[%s0 + $0x10] sm:$0xf]
  %v53 = vld [vmem:[%s0 + $0x14] sm:$0xf]
  %v54 = vld [vmem:[%s0 + $0x18] sm:$0xf]
  %v55 = vld [vmem:[%s0 + $0x1c] sm:$0xf]
  %v56 = vld [vmem:[%s0 + $0x20] sm:$0xf]
  %v57 = vld [vmem:[%s0 + $0x24] sm:$0xf]
  %v58 = vld [vmem:[%s0 + $0x28] sm:$0xf]
  %v59 = vld [vmem:[%s0 + $0x2c] sm:$0xf]
  %v60 = vld [vmem:[%s0 + $0x30] sm:$0xf]
  %v61 = vld [vmem:[%s0 + $0x34] sm:$0xf]
  %v62 = vld [vmem:[%s0 + $0x38] sm:$0xf]
  %v63 = vld [vmem:[%s0 + $0x3c] sm:$0xf]
  %v64 = vld [vmem:[%s1] sm:$0xf]
  %v65 = vld [vmem:[%s1 + $0x4] sm:$0xf]
  %v66 = vld [vmem:[%s1 + $0x8] sm:$0xf]
  %v67 = vld [vmem:[%s1 + $0xc] sm:$0xf]
  %v68 = vld [vmem:[%s1 + $0x10] sm:$0xf]
  %v69 = vld [vmem:[%s1 + $0x14] sm:$0xf]
  %v70 = vld [vmem:[%s1 + $0x18] sm:$0xf]
  %v71 = vld [vmem:[%s1 + $0x1c] sm:$0xf]
  %v72 = vld [vmem:[%s1 + $0x20] sm:$0xf]
  %v73 = vld [vmem:[%s1 + $0x24] sm:$0xf]
  %v74 = vld [vmem:[%s1 + $0x28] sm:$0xf]
  %v75 = vld [vmem:[%s1 + $0x2c] sm:$0xf]
  %v76 = vld [vmem:[%s1 + $0x30] sm:$0xf]
  %v77 = vld [vmem:[%s1 + $0x34] sm:$0xf]
  %v78 = vld [vmem:[%s1 + $0x38] sm:$0xf]
  %v79 = vld [vmem:[%s1 + $0x3c] sm:$0xf]
  %v96 = vunpack.c.l.b16 %v48
  %v97 = vunpack.c.l.b16 %v49
  %v98 = vunpack.c.l.b16 %v50
  %v99 = vunpack.c.l.b16 %v51
  %v100 = vunpack.c.l.b16 %v52
  %v101 = vunpack.c.l.b16 %v53
  %v102 = vunpack.c.l.b16 %v54
  %v103 = vunpack.c.l.b16 %v55
  %v104 = vunpack.c.l.b16 %v56
  %v105 = vunpack.c.l.b16 %v57
  %v106 = vunpack.c.l.b16 %v58
  %v107 = vunpack.c.l.b16 %v59
  %v108 = vunpack.c.l.b16 %v60
  %v109 = vunpack.c.l.b16 %v61
  %v110 = vunpack.c.l.b16 %v62
  %v111 = vunpack.c.l.b16 %v63
  %v112 = vpack.c.b16 %v97, %v96
  %v113 = vpack.c.b16 %v99, %v98
  %v114 = vpack.c.b16 %v101, %v100
  %v115 = vpack.c.b16 %v103, %v102
  %v116 = vpack.c.b16 %v105, %v104
  %v117 = vpack.c.b16 %v107, %v106
  %v118 = vpack.c.b16 %v109, %v108
  %v119 = vpack.c.b16 %v111, %v110
  %v144 = vunpack.c.l.b16 %v64
  %v145 = vunpack.c.l.b16 %v65
  %v146 = vunpack.c.l.b16 %v66
  %v147 = vunpack.c.l.b16 %v67
  %v148 = vunpack.c.l.b16 %v68
  %v149 = vunpack.c.l.b16 %v69
  %v150 = vunpack.c.l.b16 %v70
  %v151 = vunpack.c.l.b16 %v71
  %v152 = vunpack.c.l.b16 %v72
  %v153 = vunpack.c.l.b16 %v73
  %v154 = vunpack.c.l.b16 %v74
  %v155 = vunpack.c.l.b16 %v75
  %v156 = vunpack.c.l.b16 %v76
  %v157 = vunpack.c.l.b16 %v77
  %v158 = vunpack.c.l.b16 %v78
  %v159 = vunpack.c.l.b16 %v79
  %v160 = vpack.c.b16 %v145, %v144
  %v161 = vpack.c.b16 %v147, %v146
  %v162 = vpack.c.b16 %v149, %v148
  %v163 = vpack.c.b16 %v151, %v150
  %v164 = vpack.c.b16 %v153, %v152
  %v165 = vpack.c.b16 %v155, %v154
  %v166 = vpack.c.b16 %v157, %v156
  %v167 = vpack.c.b16 %v159, %v158
  %176 = vmatprep.subr.bf16.mxu0 0
  %177 = vmatpush1.bf16.msra.mxu0 %v160
  %178 = vmatprep.subr.bf16.mxu0 0
  %179 = vmatpush1.bf16.msra.mxu0 %v161
  %180 = vmatprep.subr.bf16.mxu0 0
  %181 = vmatpush1.bf16.msra.mxu0 %v162
  %182 = vmatprep.subr.bf16.mxu0 0
  %183 = vmatpush1.bf16.msra.mxu0 %v163
  %184 = vmatprep.subr.bf16.mxu0 0
  %185 = vmatpush1.bf16.msra.mxu0 %v164
  %186 = vmatprep.subr.bf16.mxu0 0
  %187 = vmatpush1.bf16.msra.mxu0 %v165
  %188 = vmatprep.subr.bf16.mxu0 0
  %189 = vmatpush1.bf16.msra.mxu0 %v166
  %190 = vmatprep.subr.bf16.mxu0 0
  %191 = vmatpush1.bf16.msra.mxu0 %v167
  %192 = vmatprep.subr.bf16.mxu0 0
  %193 = vmatpush1.bf16.msra.mxu0 0
  %194 = vmatprep.subr.bf16.mxu0 0
  %195 = vmatpush1.bf16.msra.mxu0 0
  %196 = vmatprep.subr.bf16.mxu0 0
  %197 = vmatpush1.bf16.msra.mxu0 0
  %198 = vmatprep.subr.bf16.mxu0 0
  %199 = vmatpush1.bf16.msra.mxu0 0
  %200 = vmatprep.subr.bf16.mxu0 0
  %201 = vmatpush1.bf16.msra.mxu0 0
  %202 = vmatprep.subr.bf16.mxu0 0
  %203 = vmatpush1.bf16.msra.mxu0 0
  %204 = vmatprep.subr.bf16.mxu0 0
  %205 = vmatpush1.bf16.msra.mxu0 0
  %206 = vmatprep.subr.bf16.mxu0 0
  %207 = vmatpush1.bf16.msra.mxu0 0
  %208 = vmatprep.mubr.bf16.mxu0 0
  %209 = vmatmul.mubr.bf16.gmra.mrb[0].mxu0 %v112
  %v210 = vpop.f32.mrb[0].mxu0
  %v211 = vadd.f32 0.0, %v210
  %v212 = vpop.f32.mrb[0].mxu0
  %v213 = vpop.f32.mrb[0].mxu0
  %v214 = vadd.f32 0.0, %v213
  %v215 = vpop.f32.mrb[0].mxu0
  %216 = vmatprep.mubr.bf16.mxu0 0
  %217 = vmatmul.mubr.bf16.gmra.mrb[0].mxu0 %v113
  %v218 = vpop.f32.mrb[0].mxu0
  %v219 = vadd.f32 0.0, %v218
  %v220 = vpop.f32.mrb[0].mxu0
  %v221 = vpop.f32.mrb[0].mxu0
  %v222 = vadd.f32 0.0, %v221
  %v223 = vpop.f32.mrb[0].mxu0
  %224 = vmatprep.mubr.bf16.mxu0 0
  %225 = vmatmul.mubr.bf16.gmra.mrb[0].mxu0 %v114
  %v226 = vpop.f32.mrb[0].mxu0
  %v227 = vadd.f32 0.0, %v226
  %v228 = vpop.f32.mrb[0].mxu0
  %v229 = vpop.f32.mrb[0].mxu0
  %v230 = vadd.f32 0.0, %v229
  %v231 = vpop.f32.mrb[0].mxu0
  %232 = vmatprep.mubr.bf16.mxu0 0
  %233 = vmatmul.mubr.bf16.gmra.mrb[0].mxu0 %v115
  %v234 = vpop.f32.mrb[0].mxu0
  %v235 = vadd.f32 0.0, %v234
  %v236 = vpop.f32.mrb[0].mxu0
  %v237 = vpop.f32.mrb[0].mxu0
  %v238 = vadd.f32 0.0, %v237
  %v239 = vpop.f32.mrb[0].mxu0
  %240 = vmatprep.mubr.bf16.mxu0 0
  %241 = vmatmul.mubr.bf16.gmra.mrb[0].mxu0 %v116
  %v242 = vpop.f32.mrb[0].mxu0
  %v243 = vadd.f32 0.0, %v242
  %v244 = vpop.f32.mrb[0].mxu0
  %v245 = vpop.f32.mrb[0].mxu0
  %v246 = vadd.f32 0.0, %v245
  %v247 = vpop.f32.mrb[0].mxu0
  %248 = vmatprep.mubr.bf16.mxu0 0
  %249 = vmatmul.mubr.bf16.gmra.mrb[0].mxu0 %v117
  %v250 = vpop.f32.mrb[0].mxu0
  %v251 = vadd.f32 0.0, %v250
  %v252 = vpop.f32.mrb[0].mxu0
  %v253 = vpop.f32.mrb[0].mxu0
  %v254 = vadd.f32 0.0, %v253
  %v255 = vpop.f32.mrb[0].mxu0
  %256 = vmatprep.mubr.bf16.mxu0 0
  %257 = vmatmul.mubr.bf16.gmra.mrb[0].mxu0 %v118
  %v258 = vpop.f32.mrb[0].mxu0
  %v259 = vadd.f32 0.0, %v258
  %v260 = vpop.f32.mrb[0].mxu0
  %v261 = vpop.f32.mrb[0].mxu0
  %v262 = vadd.f32 0.0, %v261
  %v263 = vpop.f32.mrb[0].mxu0
  %264 = vmatprep.mubr.bf16.mxu0 0
  %265 = vmatmul.mubr.bf16.gmra.mrb[0].mxu0 %v119
  %v266 = vpop.f32.mrb[0].mxu0
  %v267 = vadd.f32 0.0, %v266
  %v268 = vpop.f32.mrb[0].mxu0
  %v269 = vpop.f32.mrb[0].mxu0
  %v270 = vadd.f32 0.0, %v269
  %v271 = vpop.f32.mrb[0].mxu0
  %272 = vdwg.mxu0
  %v273 = vadd.f32 %v32, %v211
  %v274 = vadd.f32 %v33, %v214
  %v275 = vadd.f32 %v34, %v219
  %v276 = vadd.f32 %v35, %v222
  %v277 = vadd.f32 %v36, %v227
  %v278 = vadd.f32 %v37, %v230
  %v279 = vadd.f32 %v38, %v235
  %v280 = vadd.f32 %v39, %v238
  %v281 = vadd.f32 %v40, %v243
  %v282 = vadd.f32 %v41, %v246
  %v283 = vadd.f32 %v42, %v251
  %v284 = vadd.f32 %v43, %v254
  %v285 = vadd.f32 %v44, %v259
  %v286 = vadd.f32 %v45, %v262
  %v287 = vadd.f32 %v46, %v267
  %v288 = vadd.f32 %v47, %v270
  %289 = vst [vmem:[#allocation2] sm:$0xff] %v273
  %290 = vst [vmem:[#allocation2 + $0x8] sm:$0xff] %v274
  %291 = vst [vmem:[#allocation2 + $0x10] sm:$0xff] %v275
  %292 = vst [vmem:[#allocation2 + $0x18] sm:$0xff] %v276
  %293 = vst [vmem:[#allocation2 + $0x20] sm:$0xff] %v277
  %294 = vst [vmem:[#allocation2 + $0x28] sm:$0xff] %v278
  %295 = vst [vmem:[#allocation2 + $0x30] sm:$0xff] %v279
  %296 = vst [vmem:[#allocation2 + $0x38] sm:$0xff] %v280
  %297 = vst [vmem:[#allocation2 + $0x40] sm:$0xff] %v281
  %298 = vst [vmem:[#allocation2 + $0x48] sm:$0xff] %v282
  %299 = vst [vmem:[#allocation2 + $0x50] sm:$0xff] %v283
  %300 = vst [vmem:[#allocation2 + $0x58] sm:$0xff] %v284
  %301 = vst [vmem:[#allocation2 + $0x60] sm:$0xff] %v285
  %302 = vst [vmem:[#allocation2 + $0x68] sm:$0xff] %v286
  %303 = vst [vmem:[#allocation2 + $0x70] sm:$0xff] %v287
  %304 = vst [vmem:[#allocation2 + $0x78] sm:$0xff] %v288
  // Predicated region
  $region14: #{gcn_forward.7} parent=0 // pred_check
    %p305 = pneg %p12
  $region15: #{gcn_forward.7} parent=0 // pred_check_branch
    %307 = sbr.rel (%p305) target = $region17
  $region16: #{gcn_forward.7} parent=0 // pred_region
    %v308 = vld [vmem:[#allocation2] sm:$0xff]
    %v309 = vld [vmem:[#allocation2 + $0x8] sm:$0xff]
    %v310 = vld [vmem:[#allocation2 + $0x10] sm:$0xff]
    %v311 = vld [vmem:[#allocation2 + $0x18] sm:$0xff]
    %v312 = vld [vmem:[#allocation2 + $0x20] sm:$0xff]
    %v313 = vld [vmem:[#allocation2 + $0x28] sm:$0xff]
    %v314 = vld [vmem:[#allocation2 + $0x30] sm:$0xff]
    %v315 = vld [vmem:[#allocation2 + $0x38] sm:$0xff]
    %v316 = vld [vmem:[#allocation2 + $0x40] sm:$0xff]
    %v317 = vld [vmem:[#allocation2 + $0x48] sm:$0xff]
    %v318 = vld [vmem:[#allocation2 + $0x50] sm:$0xff]
    %v319 = vld [vmem:[#allocation2 + $0x58] sm:$0xff]
    %v320 = vld [vmem:[#allocation2 + $0x60] sm:$0xff]
    %v321 = vld [vmem:[#allocation2 + $0x68] sm:$0xff]
    %v322 = vld [vmem:[#allocation2 + $0x70] sm:$0xff]
    %v323 = vld [vmem:[#allocation2 + $0x78] sm:$0xff]
    %324 = vst [vmem:[%s2] sm:$0xff] %v308
    %325 = vst [vmem:[%s2 + $0x8] sm:$0xff] %v309
    %326 = vst [vmem:[%s2 + $0x10] sm:$0xff] %v310
    %327 = vst [vmem:[%s2 + $0x18] sm:$0xff] %v311
    %328 = vst [vmem:[%s2 + $0x20] sm:$0xff] %v312
    %329 = vst [vmem:[%s2 + $0x28] sm:$0xff] %v313
    %330 = vst [vmem:[%s2 + $0x30] sm:$0xff] %v314
    %331 = vst [vmem:[%s2 + $0x38] sm:$0xff] %v315
    %332 = vst [vmem:[%s2 + $0x40] sm:$0xff] %v316
    %333 = vst [vmem:[%s2 + $0x48] sm:$0xff] %v317
    %334 = vst [vmem:[%s2 + $0x50] sm:$0xff] %v318
    %335 = vst [vmem:[%s2 + $0x58] sm:$0xff] %v319
    %336 = vst [vmem:[%s2 + $0x60] sm:$0xff] %v320
    %337 = vst [vmem:[%s2 + $0x68] sm:$0xff] %v321
    %338 = vst [vmem:[%s2 + $0x70] sm:$0xff] %v322
    %339 = vst [vmem:[%s2 + $0x78] sm:$0xff] %v323
  $region17: #{gcn_forward.7} parent=0 // pred_fallthru
    _
  // Predicated region
  $region18: #{gcn_forward.7} parent=0 // pred_check
    _
  $region19: #{gcn_forward.7} parent=0 // pred_check_branch
    %341 = sbr.rel (0) target = $region21
  $region20: #{gcn_forward.7} parent=0 // pred_region
    _
  $region21: #{gcn_forward.7} parent=0 // pred_fallthru
    _
  // Predicated region
  $region22: #{gcn_forward.7} parent=0 // pred_check
    _
  $region23: #{gcn_forward.7} parent=0 // pred_check_branch
    %343 = sbr.rel (0) target = $region25
  $region24: #{gcn_forward.7} parent=0 // pred_region
    _
  $region25: #{gcn_forward.7} parent=0 // pred_fallthru
    _

// kernel: gcn_forward.5
$region0: #{gcn_forward.5}
  #allocation0 [shape = 'u32[]', space=smem, size = 0x4, offset = 0x4, fixed_abs, tag = 'smem constant byte address 0x4 - core index']
  #allocation1 [shape = 'u32[144,128]{1,0:T(1,128)}', space=vmem, size = 0x12000, scoped, tag = 'internal scratch']
  #allocation2 [shape = 'f32[128,128]{1,0:T(8,128)}', space=vmem, size = 0x10000, scoped, tag = 'scratch operand']
  %s0 = inlined_call_operand.vmem [shape: bf16[128,128], index: 0, kind: input, shape index: {}]
  %s1 = inlined_call_operand.vmem [shape: bf16[128,128], index: 1, kind: input, shape index: {}]
  %s2 = inlined_call_operand.vmem [shape: bf16[128,128], index: 2, kind: output, shape index: {}]
  %s3 = sld [smem:[#allocation0]]
  $region26: #{gcn_forward.5} parent=0
    _
  %s5 = ssub.s32 1, %s3
  %s6 = scalar_select 0, %s5, %s3
  // Predicated region
  $region2: #{gcn_forward.5} parent=0 // pred_check
    _
  $region3: #{gcn_forward.5} parent=0 // pred_check_branch
    %8 = sbr.rel (0) target = $region5
  $region4: #{gcn_forward.5} parent=0 // pred_region
    _
  $region5: #{gcn_forward.5} parent=0 // pred_fallthru
    _
  // Predicated region
  $region6: #{gcn_forward.5} parent=0 // pred_check
    _
  $region7: #{gcn_forward.5} parent=0 // pred_check_branch
    %10 = sbr.rel (0) target = $region9
  $region8: #{gcn_forward.5} parent=0 // pred_region
    _
  $region9: #{gcn_forward.5} parent=0 // pred_fallthru
    _
  %p12 = scmp.eq.s32.totalorder 0, 0
  // Predicated region
  $region10: #{gcn_forward.5} parent=0 // pred_check
    %p13 = pneg %p12
  $region11: #{gcn_forward.5} parent=0 // pred_check_branch
    %15 = sbr.rel (%p13) target = $region13
  $region12: #{gcn_forward.5} parent=0 // pred_region
    %16 = vst [vmem:[#allocation2] sm:$0xff] 0.0
    %17 = vst [vmem:[#allocation2 + $0x8] sm:$0xff] 0.0
    %18 = vst [vmem:[#allocation2 + $0x10] sm:$0xff] 0.0
    %19 = vst [vmem:[#allocation2 + $0x18] sm:$0xff] 0.0
    %20 = vst [vmem:[#allocation2 + $0x20] sm:$0xff] 0.0
    %21 = vst [vmem:[#allocation2 + $0x28] sm:$0xff] 0.0
    %22 = vst [vmem:[#allocation2 + $0x30] sm:$0xff] 0.0
    %23 = vst [vmem:[#allocation2 + $0x38] sm:$0xff] 0.0
    %24 = vst [vmem:[#allocation2 + $0x40] sm:$0xff] 0.0
    %25 = vst [vmem:[#allocation2 + $0x48] sm:$0xff] 0.0
    %26 = vst [vmem:[#allocation2 + $0x50] sm:$0xff] 0.0
    %27 = vst [vmem:[#allocation2 + $0x58] sm:$0xff] 0.0
    %28 = vst [vmem:[#allocation2 + $0x60] sm:$0xff] 0.0
    %29 = vst [vmem:[#allocation2 + $0x68] sm:$0xff] 0.0
    %30 = vst [vmem:[#allocation2 + $0x70] sm:$0xff] 0.0
    %31 = vst [vmem:[#allocation2 + $0x78] sm:$0xff] 0.0
  $region13: #{gcn_forward.5} parent=0 // pred_fallthru
    _
  %v32 = vld [vmem:[#allocation2] sm:$0xff]
  %v33 = vld [vmem:[#allocation2 + $0x8] sm:$0xff]
  %v34 = vld [vmem:[#allocation2 + $0x10] sm:$0xff]
  %v35 = vld [vmem:[#allocation2 + $0x18] sm:$0xff]
  %v36 = vld [vmem:[#allocation2 + $0x20] sm:$0xff]
  %v37 = vld [vmem:[#allocation2 + $0x28] sm:$0xff]
  %v38 = vld [vmem:[#allocation2 + $0x30] sm:$0xff]
  %v39 = vld [vmem:[#allocation2 + $0x38] sm:$0xff]
  %v40 = vld [vmem:[#allocation2 + $0x40] sm:$0xff]
  %v41 = vld [vmem:[#allocation2 + $0x48] sm:$0xff]
  %v42 = vld [vmem:[#allocation2 + $0x50] sm:$0xff]
  %v43 = vld [vmem:[#allocation2 + $0x58] sm:$0xff]
  %v44 = vld [vmem:[#allocation2 + $0x60] sm:$0xff]
  %v45 = vld [vmem:[#allocation2 + $0x68] sm:$0xff]
  %v46 = vld [vmem:[#allocation2 + $0x70] sm:$0xff]
  %v47 = vld [vmem:[#allocation2 + $0x78] sm:$0xff]
  %v48 = vld [vmem:[%s0] sm:$0xf]
  %v49 = vld [vmem:[%s0 + $0x4] sm:$0xf]
  %v50 = vld [vmem:[%s0 + $0x8] sm:$0xf]
  %v51 = vld [vmem:[%s0 + $0xc] sm:$0xf]
  %v52 = vld [vmem:[%s0 + $0x10] sm:$0xf]
  %v53 = vld [vmem:[%s0 + $0x14] sm:$0xf]
  %v54 = vld [vmem:[%s0 + $0x18] sm:$0xf]
  %v55 = vld [vmem:[%s0 + $0x1c] sm:$0xf]
  %v56 = vld [vmem:[%s0 + $0x20] sm:$0xf]
  %v57 = vld [vmem:[%s0 + $0x24] sm:$0xf]
  %v58 = vld [vmem:[%s0 + $0x28] sm:$0xf]
  %v59 = vld [vmem:[%s0 + $0x2c] sm:$0xf]
  %v60 = vld [vmem:[%s0 + $0x30] sm:$0xf]
  %v61 = vld [vmem:[%s0 + $0x34] sm:$0xf]
  %v62 = vld [vmem:[%s0 + $0x38] sm:$0xf]
  %v63 = vld [vmem:[%s0 + $0x3c] sm:$0xf]
  %v64 = vld [vmem:[%s1] sm:$0xf]
  %v65 = vld [vmem:[%s1 + $0x4] sm:$0xf]
  %v66 = vld [vmem:[%s1 + $0x8] sm:$0xf]
  %v67 = vld [vmem:[%s1 + $0xc] sm:$0xf]
  %v68 = vld [vmem:[%s1 + $0x10] sm:$0xf]
  %v69 = vld [vmem:[%s1 + $0x14] sm:$0xf]
  %v70 = vld [vmem:[%s1 + $0x18] sm:$0xf]
  %v71 = vld [vmem:[%s1 + $0x1c] sm:$0xf]
  %v72 = vld [vmem:[%s1 + $0x20] sm:$0xf]
  %v73 = vld [vmem:[%s1 + $0x24] sm:$0xf]
  %v74 = vld [vmem:[%s1 + $0x28] sm:$0xf]
  %v75 = vld [vmem:[%s1 + $0x2c] sm:$0xf]
  %v76 = vld [vmem:[%s1 + $0x30] sm:$0xf]
  %v77 = vld [vmem:[%s1 + $0x34] sm:$0xf]
  %v78 = vld [vmem:[%s1 + $0x38] sm:$0xf]
  %v79 = vld [vmem:[%s1 + $0x3c] sm:$0xf]
  %v96 = vunpack.c.l.b16 %v48
  %v97 = vunpack.c.l.b16 %v49
  %v98 = vunpack.c.l.b16 %v50
  %v99 = vunpack.c.l.b16 %v51
  %v100 = vunpack.c.l.b16 %v52
  %v101 = vunpack.c.l.b16 %v53
  %v102 = vunpack.c.l.b16 %v54
  %v103 = vunpack.c.l.b16 %v55
  %v104 = vunpack.c.l.b16 %v56
  %v105 = vunpack.c.l.b16 %v57
  %v106 = vunpack.c.l.b16 %v58
  %v107 = vunpack.c.l.b16 %v59
  %v108 = vunpack.c.l.b16 %v60
  %v109 = vunpack.c.l.b16 %v61
  %v110 = vunpack.c.l.b16 %v62
  %v111 = vunpack.c.l.b16 %v63
  %v112 = vpack.c.b16 %v97, %v96
  %v113 = vpack.c.b16 %v99, %v98
  %v114 = vpack.c.b16 %v101, %v100
  %v115 = vpack.c.b16 %v103, %v102
  %v116 = vpack.c.b16 %v105, %v104
  %v117 = vpack.c.b16 %v107, %v106
  %v118 = vpack.c.b16 %v109, %v108
  %v119 = vpack.c.b16 %v111, %v110
  %v144 = vunpack.c.l.b16 %v64
  %v145 = vunpack.c.l.b16 %v65
  %v146 = vunpack.c.l.b16 %v66
  %v147 = vunpack.c.l.b16 %v67
  %v148 = vunpack.c.l.b16 %v68
  %v149 = vunpack.c.l.b16 %v69
  %v150 = vunpack.c.l.b16 %v70
  %v151 = vunpack.c.l.b16 %v71
  %v152 = vunpack.c.l.b16 %v72
  %v153 = vunpack.c.l.b16 %v73
  %v154 = vunpack.c.l.b16 %v74
  %v155 = vunpack.c.l.b16 %v75
  %v156 = vunpack.c.l.b16 %v76
  %v157 = vunpack.c.l.b16 %v77
  %v158 = vunpack.c.l.b16 %v78
  %v159 = vunpack.c.l.b16 %v79
  %v160 = vpack.c.b16 %v145, %v144
  %v161 = vpack.c.b16 %v147, %v146
  %v162 = vpack.c.b16 %v149, %v148
  %v163 = vpack.c.b16 %v151, %v150
  %v164 = vpack.c.b16 %v153, %v152
  %v165 = vpack.c.b16 %v155, %v154
  %v166 = vpack.c.b16 %v157, %v156
  %v167 = vpack.c.b16 %v159, %v158
  %176 = vmatprep.subr.bf16.mxu0 0
  %177 = vmatpush1.bf16.msra.mxu0 %v160
  %178 = vmatprep.subr.bf16.mxu0 0
  %179 = vmatpush1.bf16.msra.mxu0 %v161
  %180 = vmatprep.subr.bf16.mxu0 0
  %181 = vmatpush1.bf16.msra.mxu0 %v162
  %182 = vmatprep.subr.bf16.mxu0 0
  %183 = vmatpush1.bf16.msra.mxu0 %v163
  %184 = vmatprep.subr.bf16.mxu0 0
  %185 = vmatpush1.bf16.msra.mxu0 %v164
  %186 = vmatprep.subr.bf16.mxu0 0
  %187 = vmatpush1.bf16.msra.mxu0 %v165
  %188 = vmatprep.subr.bf16.mxu0 0
  %189 = vmatpush1.bf16.msra.mxu0 %v166
  %190 = vmatprep.subr.bf16.mxu0 0
  %191 = vmatpush1.bf16.msra.mxu0 %v167
  %192 = vmatprep.subr.bf16.mxu0 0
  %193 = vmatpush1.bf16.msra.mxu0 0
  %194 = vmatprep.subr.bf16.mxu0 0
  %195 = vmatpush1.bf16.msra.mxu0 0
  %196 = vmatprep.subr.bf16.mxu0 0
  %197 = vmatpush1.bf16.msra.mxu0 0
  %198 = vmatprep.subr.bf16.mxu0 0
  %199 = vmatpush1.bf16.msra.mxu0 0
  %200 = vmatprep.subr.bf16.mxu0 0
  %201 = vmatpush1.bf16.msra.mxu0 0
  %202 = vmatprep.subr.bf16.mxu0 0
  %203 = vmatpush1.bf16.msra.mxu0 0
  %204 = vmatprep.subr.bf16.mxu0 0
  %205 = vmatpush1.bf16.msra.mxu0 0
  %206 = vmatprep.subr.bf16.mxu0 0
  %207 = vmatpush1.bf16.msra.mxu0 0
  %208 = vmatprep.mubr.bf16.mxu0 0
  %209 = vmatmul.mubr.bf16.gmra.mrb[0].mxu0 %v112
  %v210 = vpop.f32.mrb[0].mxu0
  %v211 = vadd.f32 0.0, %v210
  %v212 = vpop.f32.mrb[0].mxu0
  %v213 = vpop.f32.mrb[0].mxu0
  %v214 = vadd.f32 0.0, %v213
  %v215 = vpop.f32.mrb[0].mxu0
  %216 = vmatprep.mubr.bf16.mxu0 0
  %217 = vmatmul.mubr.bf16.gmra.mrb[0].mxu0 %v113
  %v218 = vpop.f32.mrb[0].mxu0
  %v219 = vadd.f32 0.0, %v218
  %v220 = vpop.f32.mrb[0].mxu0
  %v221 = vpop.f32.mrb[0].mxu0
  %v222 = vadd.f32 0.0, %v221
  %v223 = vpop.f32.mrb[0].mxu0
  %224 = vmatprep.mubr.bf16.mxu0 0
  %225 = vmatmul.mubr.bf16.gmra.mrb[0].mxu0 %v114
  %v226 = vpop.f32.mrb[0].mxu0
  %v227 = vadd.f32 0.0, %v226
  %v228 = vpop.f32.mrb[0].mxu0
  %v229 = vpop.f32.mrb[0].mxu0
  %v230 = vadd.f32 0.0, %v229
  %v231 = vpop.f32.mrb[0].mxu0
  %232 = vmatprep.mubr.bf16.mxu0 0
  %233 = vmatmul.mubr.bf16.gmra.mrb[0].mxu0 %v115
  %v234 = vpop.f32.mrb[0].mxu0
  %v235 = vadd.f32 0.0, %v234
  %v236 = vpop.f32.mrb[0].mxu0
  %v237 = vpop.f32.mrb[0].mxu0
  %v238 = vadd.f32 0.0, %v237
  %v239 = vpop.f32.mrb[0].mxu0
  %240 = vmatprep.mubr.bf16.mxu0 0
  %241 = vmatmul.mubr.bf16.gmra.mrb[0].mxu0 %v116
  %v242 = vpop.f32.mrb[0].mxu0
  %v243 = vadd.f32 0.0, %v242
  %v244 = vpop.f32.mrb[0].mxu0
  %v245 = vpop.f32.mrb[0].mxu0
  %v246 = vadd.f32 0.0, %v245
  %v247 = vpop.f32.mrb[0].mxu0
  %248 = vmatprep.mubr.bf16.mxu0 0
  %249 = vmatmul.mubr.bf16.gmra.mrb[0].mxu0 %v117
  %v250 = vpop.f32.mrb[0].mxu0
  %v251 = vadd.f32 0.0, %v250
  %v252 = vpop.f32.mrb[0].mxu0
  %v253 = vpop.f32.mrb[0].mxu0
  %v254 = vadd.f32 0.0, %v253
  %v255 = vpop.f32.mrb[0].mxu0
  %256 = vmatprep.mubr.bf16.mxu0 0
  %257 = vmatmul.mubr.bf16.gmra.mrb[0].mxu0 %v118
  %v258 = vpop.f32.mrb[0].mxu0
  %v259 = vadd.f32 0.0, %v258
  %v260 = vpop.f32.mrb[0].mxu0
  %v261 = vpop.f32.mrb[0].mxu0
  %v262 = vadd.f32 0.0, %v261
  %v263 = vpop.f32.mrb[0].mxu0
  %264 = vmatprep.mubr.bf16.mxu0 0
  %265 = vmatmul.mubr.bf16.gmra.mrb[0].mxu0 %v119
  %v266 = vpop.f32.mrb[0].mxu0
  %v267 = vadd.f32 0.0, %v266
  %v268 = vpop.f32.mrb[0].mxu0
  %v269 = vpop.f32.mrb[0].mxu0
  %v270 = vadd.f32 0.0, %v269
  %v271 = vpop.f32.mrb[0].mxu0
  %272 = vdwg.mxu0
  %v273 = vadd.f32 %v32, %v211
  %v274 = vadd.f32 %v33, %v214
  %v275 = vadd.f32 %v34, %v219
  %v276 = vadd.f32 %v35, %v222
  %v277 = vadd.f32 %v36, %v227
  %v278 = vadd.f32 %v37, %v230
  %v279 = vadd.f32 %v38, %v235
  %v280 = vadd.f32 %v39, %v238
  %v281 = vadd.f32 %v40, %v243
  %v282 = vadd.f32 %v41, %v246
  %v283 = vadd.f32 %v42, %v251
  %v284 = vadd.f32 %v43, %v254
  %v285 = vadd.f32 %v44, %v259
  %v286 = vadd.f32 %v45, %v262
  %v287 = vadd.f32 %v46, %v267
  %v288 = vadd.f32 %v47, %v270
  %289 = vst [vmem:[#allocation2] sm:$0xff] %v273
  %290 = vst [vmem:[#allocation2 + $0x8] sm:$0xff] %v274
  %291 = vst [vmem:[#allocation2 + $0x10] sm:$0xff] %v275
  %292 = vst [vmem:[#allocation2 + $0x18] sm:$0xff] %v276
  %293 = vst [vmem:[#allocation2 + $0x20] sm:$0xff] %v277
  %294 = vst [vmem:[#allocation2 + $0x28] sm:$0xff] %v278
  %295 = vst [vmem:[#allocation2 + $0x30] sm:$0xff] %v279
  %296 = vst [vmem:[#allocation2 + $0x38] sm:$0xff] %v280
  %297 = vst [vmem:[#allocation2 + $0x40] sm:$0xff] %v281
  %298 = vst [vmem:[#allocation2 + $0x48] sm:$0xff] %v282
  %299 = vst [vmem:[#allocation2 + $0x50] sm:$0xff] %v283
  %300 = vst [vmem:[#allocation2 + $0x58] sm:$0xff] %v284
  %301 = vst [vmem:[#allocation2 + $0x60] sm:$0xff] %v285
  %302 = vst [vmem:[#allocation2 + $0x68] sm:$0xff] %v286
  %303 = vst [vmem:[#allocation2 + $0x70] sm:$0xff] %v287
  %304 = vst [vmem:[#allocation2 + $0x78] sm:$0xff] %v288
  // Predicated region
  $region14: #{gcn_forward.5} parent=0 // pred_check
    %p305 = pneg %p12
  $region15: #{gcn_forward.5} parent=0 // pred_check_branch
    %307 = sbr.rel (%p305) target = $region17
  $region16: #{gcn_forward.5} parent=0 // pred_region
    %v308 = vld [vmem:[#allocation2] sm:$0xff]
    %v309 = vld [vmem:[#allocation2 + $0x8] sm:$0xff]
    %v310 = vld [vmem:[#allocation2 + $0x10] sm:$0xff]
    %v311 = vld [vmem:[#allocation2 + $0x18] sm:$0xff]
    %v312 = vld [vmem:[#allocation2 + $0x20] sm:$0xff]
    %v313 = vld [vmem:[#allocation2 + $0x28] sm:$0xff]
    %v314 = vld [vmem:[#allocation2 + $0x30] sm:$0xff]
    %v315 = vld [vmem:[#allocation2 + $0x38] sm:$0xff]
    %v316 = vld [vmem:[#allocation2 + $0x40] sm:$0xff]
    %v317 = vld [vmem:[#allocation2 + $0x48] sm:$0xff]
    %v318 = vld [vmem:[#allocation2 + $0x50] sm:$0xff]
    %v319 = vld [vmem:[#allocation2 + $0x58] sm:$0xff]
    %v320 = vld [vmem:[#allocation2 + $0x60] sm:$0xff]
    %v321 = vld [vmem:[#allocation2 + $0x68] sm:$0xff]
    %v322 = vld [vmem:[#allocation2 + $0x70] sm:$0xff]
    %v323 = vld [vmem:[#allocation2 + $0x78] sm:$0xff]
    %v324 = vmax.f32 %v308, 0.0
    %v325 = vmax.f32 %v309, 0.0
    %v326 = vmax.f32 %v310, 0.0
    %v327 = vmax.f32 %v311, 0.0
    %v328 = vmax.f32 %v312, 0.0
    %v329 = vmax.f32 %v313, 0.0
    %v330 = vmax.f32 %v314, 0.0
    %v331 = vmax.f32 %v315, 0.0
    %v332 = vmax.f32 %v316, 0.0
    %v333 = vmax.f32 %v317, 0.0
    %v334 = vmax.f32 %v318, 0.0
    %v335 = vmax.f32 %v319, 0.0
    %v336 = vmax.f32 %v320, 0.0
    %v337 = vmax.f32 %v321, 0.0
    %v338 = vmax.f32 %v322, 0.0
    %v339 = vmax.f32 %v323, 0.0
    %v340 = vpack.c.bf16 %v325, %v324
    %v341 = vpack.c.bf16 %v327, %v326
    %v342 = vpack.c.bf16 %v329, %v328
    %v343 = vpack.c.bf16 %v331, %v330
    %v344 = vpack.c.bf16 %v333, %v332
    %v345 = vpack.c.bf16 %v335, %v334
    %v346 = vpack.c.bf16 %v337, %v336
    %v347 = vpack.c.bf16 %v339, %v338
    %v356 = vunpack.c.l.b16 %v340
    %v357 = vunpack.c.h.b16 %v340
    %v358 = vunpack.c.l.b16 %v341
    %v359 = vunpack.c.h.b16 %v341
    %v360 = vunpack.c.l.b16 %v342
    %v361 = vunpack.c.h.b16 %v342
    %v362 = vunpack.c.l.b16 %v343
    %v363 = vunpack.c.h.b16 %v343
    %v364 = vunpack.c.l.b16 %v344
    %v365 = vunpack.c.h.b16 %v344
    %v366 = vunpack.c.l.b16 %v345
    %v367 = vunpack.c.h.b16 %v345
    %v368 = vunpack.c.l.b16 %v346
    %v369 = vunpack.c.h.b16 %v346
    %v370 = vunpack.c.l.b16 %v347
    %v371 = vunpack.c.h.b16 %v347
    %v372 = vpack.c.b16 %v356, %v356
    %v373 = vpack.c.b16 %v357, %v357
    %v374 = vpack.c.b16 %v358, %v358
    %v375 = vpack.c.b16 %v359, %v359
    %v376 = vpack.c.b16 %v360, %v360
    %v377 = vpack.c.b16 %v361, %v361
    %v378 = vpack.c.b16 %v362, %v362
    %v379 = vpack.c.b16 %v363, %v363
    %v380 = vpack.c.b16 %v364, %v364
    %v381 = vpack.c.b16 %v365, %v365
    %v382 = vpack.c.b16 %v366, %v366
    %v383 = vpack.c.b16 %v367, %v367
    %v384 = vpack.c.b16 %v368, %v368
    %v385 = vpack.c.b16 %v369, %v369
    %v386 = vpack.c.b16 %v370, %v370
    %v387 = vpack.c.b16 %v371, %v371
    %404 = vst [vmem:[%s2] sm:$0xf] %v372
    %405 = vst [vmem:[%s2 + $0x4] sm:$0xf] %v373
    %406 = vst [vmem:[%s2 + $0x8] sm:$0xf] %v374
    %407 = vst [vmem:[%s2 + $0xc] sm:$0xf] %v375
    %408 = vst [vmem:[%s2 + $0x10] sm:$0xf] %v376
    %409 = vst [vmem:[%s2 + $0x14] sm:$0xf] %v377
    %410 = vst [vmem:[%s2 + $0x18] sm:$0xf] %v378
    %411 = vst [vmem:[%s2 + $0x1c] sm:$0xf] %v379
    %412 = vst [vmem:[%s2 + $0x20] sm:$0xf] %v380
    %413 = vst [vmem:[%s2 + $0x24] sm:$0xf] %v381
    %414 = vst [vmem:[%s2 + $0x28] sm:$0xf] %v382
    %415 = vst [vmem:[%s2 + $0x2c] sm:$0xf] %v383
    %416 = vst [vmem:[%s2 + $0x30] sm:$0xf] %v384
    %417 = vst [vmem:[%s2 + $0x34] sm:$0xf] %v385
    %418 = vst [vmem:[%s2 + $0x38] sm:$0xf] %v386
    %419 = vst [vmem:[%s2 + $0x3c] sm:$0xf] %v387
  $region17: #{gcn_forward.5} parent=0 // pred_fallthru
    _
  // Predicated region
  $region18: #{gcn_forward.5} parent=0 // pred_check
    _
  $region19: #{gcn_forward.5} parent=0 // pred_check_branch
    %421 = sbr.rel (0) target = $region21
  $region20: #{gcn_forward.5} parent=0 // pred_region
    _
  $region21: #{gcn_forward.5} parent=0 // pred_fallthru
    _
  // Predicated region
  $region22: #{gcn_forward.5} parent=0 // pred_check
    _
  $region23: #{gcn_forward.5} parent=0 // pred_check_branch
    %423 = sbr.rel (0) target = $region25
  $region24: #{gcn_forward.5} parent=0 // pred_region
    _
  $region25: #{gcn_forward.5} parent=0 // pred_fallthru
    _

</llo_original>
